<compile_context>
chip_gen: v6e
topology: v6e:2x2x1
jax: 0.10.0
libtpu: 0.0.40
codegen_flags: <defaults>
</compile_context>

<pallas_src>
import jax
import jax.numpy as jnp
import numpy as np
from jax.experimental import pallas as pl
from jax.experimental.pallas import tpu as pltpu


# ----------------------------------------------------------------------------
# Conv3x3 + ReLU kernel (representation), output in torch-flatten layout
# ----------------------------------------------------------------------------
def _make_conv_relu_kernel(H, W):
    HW = H * W
    off = W + 1                       # lane offset of pixel (0,0) in the flat pad
    w_is_pow2 = (W & (W - 1)) == 0

    def kernel(z_ref, w_ref, b_ref, o_ref):
        # z_ref: [1, C, L]   f32  flat, row-padded image (zeros outside data)
        # w_ref: [9, TF, C]  bf16 conv weight, tap index k = ky*3 + kx
        # b_ref: [TF, 1]     f32
        # o_ref: [1, TF, HW] f32  -> rep block for this (batch, filter-block)
        TF = w_ref.shape[1]
        zimg = z_ref[0]                                        # [C, L] f32

        lane = jax.lax.broadcasted_iota(jnp.int32, (1, HW), 1)
        wcol = (lane & (W - 1)) if w_is_pow2 else (lane % W)   # column index

        acc = jnp.zeros((TF, HW), jnp.float32)
        for ky in range(3):
            for kx in range(3):
                dy, dx = ky - 1, kx - 1
                start = off + dy * W + dx                      # static offset
                tap = zimg[:, start:start + HW]                # [C, HW] f32
                # Row (h) boundary is handled by the flat zero padding; the
                # column (w) boundary needs an explicit mask because a flat
                # shift wraps into the neighbouring row.
                if dx == -1:
                    tap = jnp.where(wcol >= 1, tap, jnp.zeros_like(tap))
                elif dx == 1:
                    tap = jnp.where(wcol <= W - 2, tap, jnp.zeros_like(tap))
                acc = acc + jnp.dot(w_ref[ky * 3 + kx],
                                    tap.astype(jnp.bfloat16),
                                    preferred_element_type=jnp.float32)
        o_ref[0] = jnp.maximum(acc + b_ref[...], 0.0)

    return kernel


def backbone_hidden(x, conv_w, conv_b):
    """flatten(ReLU(conv3x3(x))) with PyTorch NCHW flatten order."""
    B, C, H, W = x.shape
    F = conv_w.shape[0]
    HW = H * W
    off = W + 1
    L = ((HW + 2 * off + 127) // 128) * 128          # lane-padded flat length

    # Flat row-padded image: z[b, c, off + h*W + w] = x[b, c, h, w].
    # (One cheap zero-pad pass; no 9x im2col expansion, no transpose.)
    z = jnp.pad(x.reshape(B, C, HW), ((0, 0), (0, 0), (off, L - HW - off)))
    w_r = conv_w.transpose(2, 3, 0, 1).reshape(9, F, C).astype(jnp.bfloat16)
    b_r = conv_b.reshape(F, 1).astype(jnp.float32)

    TF = F if F <= 256 else 256                      # filter-block size
    assert F % TF == 0

    conv_out = pl.pallas_call(
        _make_conv_relu_kernel(H, W),
        grid=(B, F // TF),
        in_specs=[
            pl.BlockSpec((1, C, L), lambda b, f: (b, 0, 0)),
            pl.BlockSpec((9, TF, C), lambda b, f: (0, f, 0)),
            pl.BlockSpec((TF, 1), lambda b, f: (f, 0)),
        ],
        out_specs=pl.BlockSpec((1, TF, HW), lambda b, f: (b, f, 0)),
        out_shape=jax.ShapeDtypeStruct((B, F, HW), jnp.float32),
        compiler_params=pltpu.CompilerParams(
            dimension_semantics=("parallel", "parallel"),
            vmem_limit_bytes=32 * 1024 * 1024),
    )(z, w_r, b_r)

    # [B, F, H*W] -> [B, F*H*W] is a contiguous collapse == torch flatten order.
    return conv_out.reshape(B, F * HW)


# ----------------------------------------------------------------------------
# Projector MLP kernel: Linear -> BatchNorm1d(train) -> ReLU -> Linear
# ----------------------------------------------------------------------------
def _projector_kernel(x_ref, w1_ref, b1_ref, g_ref, bt_ref, w2_ref, b2_ref,
                      o_ref, acc_ref):
    # Grid runs over the D (reduction) axis only; the batch axis is never
    # tiled so the BatchNorm batch statistics below are exact.
    k = pl.program_id(0)

    @pl.when(k == 0)
    def _():
        acc_ref[...] = jnp.zeros_like(acc_ref)

    acc_ref[...] += jnp.dot(x_ref[...].astype(jnp.bfloat16), w1_ref[...],
                            preferred_element_type=jnp.float32)

    @pl.when(k == pl.num_programs(0) - 1)
    def _():
        h = acc_ref[...] + b1_ref[...]
        # BatchNorm1d, training mode: biased batch stats, eps = 1e-5.
        # Lane-padded hidden columns have zero weight/bias -> h == 0 there,
        # so they normalize to 0 (no NaN) and are zeroed again by gamma_pad=0
        # and the zero rows of w2_pad.
        mean = jnp.mean(h, axis=0, keepdims=True)
        var = jnp.mean(jnp.square(h - mean), axis=0, keepdims=True)
        hn = (h - mean) * jax.lax.rsqrt(var + 1e-5)
        hn = hn * g_ref[...] + bt_ref[...]
        hn = jnp.maximum(hn, 0.0)
        o_ref[...] = jnp.dot(hn, w2_ref[...],
                             preferred_element_type=jnp.float32) + b2_ref[...]


def projector(rep, w1, b1, gamma, beta, w2, b2):
    B, D = rep.shape
    Hd = w1.shape[0]
    P = w2.shape[0]
    Hp = ((Hd + 127) // 128) * 128                   # lane-pad hidden dim
    Pp = ((P + 127) // 128) * 128                    # lane-pad output dim

    w1p = jnp.pad(w1.T, ((0, 0), (0, Hp - Hd))).astype(jnp.bfloat16)   # [D, Hp]
    b1p = jnp.pad(b1, (0, Hp - Hd)).reshape(1, Hp)
    gp = jnp.pad(gamma, (0, Hp - Hd)).reshape(1, Hp)
    btp = jnp.pad(beta, (0, Hp - Hd)).reshape(1, Hp)
    w2p = jnp.pad(w2.T, ((0, Hp - Hd), (0, Pp - P)))                   # [Hp, Pp]
    b2p = jnp.pad(b2, (0, Pp - P)).reshape(1, Pp)

    TK = next(t for t in (512, 256, 128, D) if D % t == 0)
    nk = D // TK

    out = pl.pallas_call(
        _projector_kernel,
        grid=(nk,),
        in_specs=[
            pl.BlockSpec((B, TK), lambda k: (0, k)),
            pl.BlockSpec((TK, Hp), lambda k: (k, 0)),
            pl.BlockSpec((1, Hp), lambda k: (0, 0)),
            pl.BlockSpec((1, Hp), lambda k: (0, 0)),
            pl.BlockSpec((1, Hp), lambda k: (0, 0)),
            pl.BlockSpec((Hp, Pp), lambda k: (0, 0)),
            pl.BlockSpec((1, Pp), lambda k: (0, 0)),
        ],
        out_specs=pl.BlockSpec((B, Pp), lambda k: (0, 0)),
        out_shape=jax.ShapeDtypeStruct((B, Pp), jnp.float32),
        scratch_shapes=[pltpu.VMEM((B, Hp), jnp.float32)],
        compiler_params=pltpu.CompilerParams(
            dimension_semantics=("arbitrary",),
            vmem_limit_bytes=32 * 1024 * 1024),
    )(rep, w1p, b1p, gp, btp, w2p, b2p)
    return out[:, :P]


# ----------------------------------------------------------------------------
# NetWrapper.forward
# ----------------------------------------------------------------------------
def netwrapper_forward(x, params, return_projection=True):
    rep = backbone_hidden(x, params["conv_w"], params["conv_b"])
    # TODO(synk): the backbone head after the hooked ReLU (`_ = self.net(x)`)
    # is computed-then-discarded in PyTorch; skipped here since it never
    # affects the returned values.  BN running-stat buffer updates are also
    # not modeled (forward output uses batch stats, as in training mode).
    if not return_projection:
        return rep
    proj = projector(rep, params["w1"], params["b1"], params["gamma"],
                     params["beta"], params["w2"], params["b2"])
    return proj, rep


# ----------------------------------------------------------------------------
# Pure-JAX references (mirror the kernels' bf16-input / f32-accumulate dots)
# ----------------------------------------------------------------------------
def _reference_representation(x, params):
    B, C, H, W = x.shape
    F = params["conv_w"].shape[0]
    xr = x.astype(jnp.bfloat16).astype(jnp.float32)
    wr = params["conv_w"].astype(jnp.bfloat16).astype(jnp.float32)
    xp = jnp.pad(xr, ((0, 0), (0, 0), (1, 1), (1, 1)))
    taps = [xp[:, :, ky:ky + H, kx:kx + W] for ky in range(3) for kx in range(3)]
    pat = jnp.stack(taps, axis=2)                              # [B, C, 9, H, W]
    conv = jnp.einsum("bckhw,fck->bfhw", pat, wr.reshape(F, C, 9),
                      precision=jax.lax.Precision.HIGHEST)
    conv = conv + params["conv_b"][None, :, None, None]
    return jnp.maximum(conv, 0.0).reshape(B, -1)


def _reference_projection(rep, params):
    repb = rep.astype(jnp.bfloat16).astype(jnp.float32)
    w1b = params["w1"].astype(jnp.bfloat16).astype(jnp.float32)
    h = jnp.dot(repb, w1b.T, precision=jax.lax.Precision.HIGHEST) + params["b1"]
    mean = jnp.mean(h, axis=0, keepdims=True)
    var = jnp.mean(jnp.square(h - mean), axis=0, keepdims=True)
    hn = (h - mean) * jax.lax.rsqrt(var + 1e-5)
    hn = hn * params["gamma"] + params["beta"]
    hn = jnp.maximum(hn, 0.0)
    return jnp.dot(hn, params["w2"].T,
                   precision=jax.lax.Precision.HIGHEST) + params["b2"]


# ----------------------------------------------------------------------------
# Main
# ----------------------------------------------------------------------------
if __name__ == "__main__":
    key = jax.random.PRNGKey(0)
    B, C, H, W = 2, 4, 16, 16
    F = 8                          # backbone conv output channels
    D = F * H * W                  # representation dim = 2048
    proj_hidden = 64               # projection_hidden_size
    proj_size = 32                 # projection_size

    ks = jax.random.split(key, 8)
    x = jax.random.normal(ks[0], (B, C, H, W), dtype=jnp.float32)

    params = {
        "conv_w": 0.1 * jax.random.normal(ks[1], (F, C, 3, 3), jnp.float32),
        "conv_b": 0.1 * jax.random.normal(ks[2], (F,), jnp.float32),
        # projector: Linear(D, proj_hidden) -> BN1d -> ReLU -> Linear(proj_hidden, proj_size)
        "w1": 0.02 * jax.random.normal(ks[3], (proj_hidden, D), jnp.float32),
        "b1": 0.02 * jax.random.normal(ks[4], (proj_hidden,), jnp.float32),
        "gamma": jnp.ones((proj_hidden,), jnp.float32),
        "beta": jnp.zeros((proj_hidden,), jnp.float32),
        "w2": 0.05 * jax.random.normal(ks[5], (proj_size, proj_hidden), jnp.float32),
        "b2": 0.05 * jax.random.normal(ks[6], (proj_size,), jnp.float32),
    }

    projection, representation = jax.jit(netwrapper_forward)(x, params)
    jax.block_until_ready((projection, representation))

    assert projection.shape == (B, proj_size)
    assert representation.shape == (B, D)

    # Numerical check vs pure-JAX references (same bf16 input rounding,
    # f32 accumulation; tolerances cover reduction-order differences).
    ref_rep = _reference_representation(x, params)
    np.testing.assert_allclose(np.asarray(representation), np.asarray(ref_rep),
                               rtol=1e-3, atol=1e-3)
    ref_proj = _reference_projection(representation, params)
    np.testing.assert_allclose(np.asarray(projection), np.asarray(ref_proj),
                               rtol=1e-2, atol=1e-2)

    print("KERNEL_OK")
</pallas_src>

<mosaic_0001>
module attributes {stable_mosaic.version = 11 : i64} {
  func.func @kernel(%arg0: i32, %arg1: i32, %arg2: memref<1x4x384xf32, #tpu.memory_space<vmem>>, %arg3: memref<9x8x4xbf16, #tpu.memory_space<vmem>>, %arg4: memref<8x1xf32, #tpu.memory_space<vmem>>, %arg5: memref<1x8x256xf32, #tpu.memory_space<vmem>>) attributes {dimension_semantics = [#tpu.dimension_semantics<parallel>, #tpu.dimension_semantics<parallel>], iteration_bounds = array<i64: 2, 1>, scalar_prefetch = 0 : i64, scratch_operands = 0 : i64, tpu.core_type = #tpu.core_type<tc>, window_params = [{transform_indices = @transform_0, window_bounds = array<i64: 1, 4, 384>}, {transform_indices = @transform_1, window_bounds = array<i64: 9, 8, 4>}, {transform_indices = @transform_2, window_bounds = array<i64: 8, 1>}, {transform_indices = @transform_3, window_bounds = array<i64: 1, 8, 256>}]} {
    %c0 = arith.constant 0 : index
    %c0_0 = arith.constant 0 : index
    %c0_1 = arith.constant 0 : index
    %0 = vector.load %arg2[%c0, %c0_0, %c0_1] : memref<1x4x384xf32, #tpu.memory_space<vmem>>, vector<1x4x384xf32>
    %1 = vector.shape_cast %0 : vector<1x4x384xf32> to vector<4x384xf32>
    %2 = tpu.iota {dimensions = array<i32: 1>} : vector<1x256xi32>
    %c15_i32 = arith.constant 15 : i32
    %3 = vector.broadcast %c15_i32 : i32 to vector<1x256xi32>
    %4 = arith.andi %2, %3 : vector<1x256xi32>
    %cst = arith.constant 0.000000e+00 : f32
    %5 = vector.broadcast %cst : f32 to vector<8x256xf32>
    %6 = vector.extract_strided_slice %1 {offsets = [0, 0], sizes = [4, 256], strides = [1, 1]} : vector<4x384xf32> to vector<4x256xf32>
    %c1_i32 = arith.constant 1 : i32
    %7 = vector.broadcast %c1_i32 : i32 to vector<1x256xi32>
    %8 = arith.cmpi sge, %4, %7 : vector<1x256xi32>
    %cst_2 = arith.constant 0.000000e+00 : f32
    %9 = vector.broadcast %cst_2 : f32 to vector<4x256xf32>
    %10 = vector.shape_cast %8 : vector<1x256xi1> to vector<1x256xi1>
    %11 = vector.broadcast %10 : vector<1x256xi1> to vector<4x256xi1>
    %12 = arith.select %11, %6, %9 : vector<4x256xi1>, vector<4x256xf32>
    %c0_3 = arith.constant 0 : index
    %c0_4 = arith.constant 0 : index
    %c0_5 = arith.constant 0 : index
    %13 = vector.load %arg3[%c0_3, %c0_4, %c0_5] : memref<9x8x4xbf16, #tpu.memory_space<vmem>>, vector<1x8x4xbf16>
    %14 = vector.shape_cast %13 : vector<1x8x4xbf16> to vector<8x4xbf16>
    %15 = arith.truncf %12 : vector<4x256xf32> to vector<4x256xbf16>
    %cst_6 = arith.constant dense<0.000000e+00> : vector<8x256xf32>
    %16 = tpu.matmul %14, %15, %cst_6 {dimension_numbers = #tpu.dot_dimension_numbers<[1], [0], [0], [1], [0, 0, 1, 1], [], []>} : vector<8x4xbf16>, vector<4x256xbf16>, vector<8x256xf32> -> vector<8x256xf32>
    %17 = arith.addf %5, %16 : vector<8x256xf32>
    %18 = vector.extract_strided_slice %1 {offsets = [0, 1], sizes = [4, 256], strides = [1, 1]} : vector<4x384xf32> to vector<4x256xf32>
    %c1 = arith.constant 1 : index
    %c0_7 = arith.constant 0 : index
    %c0_8 = arith.constant 0 : index
    %19 = vector.load %arg3[%c1, %c0_7, %c0_8] : memref<9x8x4xbf16, #tpu.memory_space<vmem>>, vector<1x8x4xbf16>
    %20 = vector.shape_cast %19 : vector<1x8x4xbf16> to vector<8x4xbf16>
    %21 = arith.truncf %18 : vector<4x256xf32> to vector<4x256xbf16>
    %cst_9 = arith.constant dense<0.000000e+00> : vector<8x256xf32>
    %22 = tpu.matmul %20, %21, %cst_9 {dimension_numbers = #tpu.dot_dimension_numbers<[1], [0], [0], [1], [0, 0, 1, 1], [], []>} : vector<8x4xbf16>, vector<4x256xbf16>, vector<8x256xf32> -> vector<8x256xf32>
    %23 = arith.addf %17, %22 : vector<8x256xf32>
    %24 = vector.extract_strided_slice %1 {offsets = [0, 2], sizes = [4, 256], strides = [1, 1]} : vector<4x384xf32> to vector<4x256xf32>
    %c14_i32 = arith.constant 14 : i32
    %25 = vector.broadcast %c14_i32 : i32 to vector<1x256xi32>
    %26 = arith.cmpi sle, %4, %25 : vector<1x256xi32>
    %cst_10 = arith.constant 0.000000e+00 : f32
    %27 = vector.broadcast %cst_10 : f32 to vector<4x256xf32>
    %28 = vector.shape_cast %26 : vector<1x256xi1> to vector<1x256xi1>
    %29 = vector.broadcast %28 : vector<1x256xi1> to vector<4x256xi1>
    %30 = arith.select %29, %24, %27 : vector<4x256xi1>, vector<4x256xf32>
    %c2 = arith.constant 2 : index
    %c0_11 = arith.constant 0 : index
    %c0_12 = arith.constant 0 : index
    %31 = vector.load %arg3[%c2, %c0_11, %c0_12] : memref<9x8x4xbf16, #tpu.memory_space<vmem>>, vector<1x8x4xbf16>
    %32 = vector.shape_cast %31 : vector<1x8x4xbf16> to vector<8x4xbf16>
    %33 = arith.truncf %30 : vector<4x256xf32> to vector<4x256xbf16>
    %cst_13 = arith.constant dense<0.000000e+00> : vector<8x256xf32>
    %34 = tpu.matmul %32, %33, %cst_13 {dimension_numbers = #tpu.dot_dimension_numbers<[1], [0], [0], [1], [0, 0, 1, 1], [], []>} : vector<8x4xbf16>, vector<4x256xbf16>, vector<8x256xf32> -> vector<8x256xf32>
    %35 = arith.addf %23, %34 : vector<8x256xf32>
    %36 = vector.extract_strided_slice %1 {offsets = [0, 16], sizes = [4, 256], strides = [1, 1]} : vector<4x384xf32> to vector<4x256xf32>
    %c1_i32_14 = arith.constant 1 : i32
    %37 = vector.broadcast %c1_i32_14 : i32 to vector<1x256xi32>
    %38 = arith.cmpi sge, %4, %37 : vector<1x256xi32>
    %cst_15 = arith.constant 0.000000e+00 : f32
    %39 = vector.broadcast %cst_15 : f32 to vector<4x256xf32>
    %40 = vector.shape_cast %38 : vector<1x256xi1> to vector<1x256xi1>
    %41 = vector.broadcast %40 : vector<1x256xi1> to vector<4x256xi1>
    %42 = arith.select %41, %36, %39 : vector<4x256xi1>, vector<4x256xf32>
    %c3 = arith.constant 3 : index
    %c0_16 = arith.constant 0 : index
    %c0_17 = arith.constant 0 : index
    %43 = vector.load %arg3[%c3, %c0_16, %c0_17] : memref<9x8x4xbf16, #tpu.memory_space<vmem>>, vector<1x8x4xbf16>
    %44 = vector.shape_cast %43 : vector<1x8x4xbf16> to vector<8x4xbf16>
    %45 = arith.truncf %42 : vector<4x256xf32> to vector<4x256xbf16>
    %cst_18 = arith.constant dense<0.000000e+00> : vector<8x256xf32>
    %46 = tpu.matmul %44, %45, %cst_18 {dimension_numbers = #tpu.dot_dimension_numbers<[1], [0], [0], [1], [0, 0, 1, 1], [], []>} : vector<8x4xbf16>, vector<4x256xbf16>, vector<8x256xf32> -> vector<8x256xf32>
    %47 = arith.addf %35, %46 : vector<8x256xf32>
    %48 = vector.extract_strided_slice %1 {offsets = [0, 17], sizes = [4, 256], strides = [1, 1]} : vector<4x384xf32> to vector<4x256xf32>
    %c4 = arith.constant 4 : index
    %c0_19 = arith.constant 0 : index
    %c0_20 = arith.constant 0 : index
    %49 = vector.load %arg3[%c4, %c0_19, %c0_20] : memref<9x8x4xbf16, #tpu.memory_space<vmem>>, vector<1x8x4xbf16>
    %50 = vector.shape_cast %49 : vector<1x8x4xbf16> to vector<8x4xbf16>
    %51 = arith.truncf %48 : vector<4x256xf32> to vector<4x256xbf16>
    %cst_21 = arith.constant dense<0.000000e+00> : vector<8x256xf32>
    %52 = tpu.matmul %50, %51, %cst_21 {dimension_numbers = #tpu.dot_dimension_numbers<[1], [0], [0], [1], [0, 0, 1, 1], [], []>} : vector<8x4xbf16>, vector<4x256xbf16>, vector<8x256xf32> -> vector<8x256xf32>
    %53 = arith.addf %47, %52 : vector<8x256xf32>
    %54 = vector.extract_strided_slice %1 {offsets = [0, 18], sizes = [4, 256], strides = [1, 1]} : vector<4x384xf32> to vector<4x256xf32>
    %c14_i32_22 = arith.constant 14 : i32
    %55 = vector.broadcast %c14_i32_22 : i32 to vector<1x256xi32>
    %56 = arith.cmpi sle, %4, %55 : vector<1x256xi32>
    %cst_23 = arith.constant 0.000000e+00 : f32
    %57 = vector.broadcast %cst_23 : f32 to vector<4x256xf32>
    %58 = vector.shape_cast %56 : vector<1x256xi1> to vector<1x256xi1>
    %59 = vector.broadcast %58 : vector<1x256xi1> to vector<4x256xi1>
    %60 = arith.select %59, %54, %57 : vector<4x256xi1>, vector<4x256xf32>
    %c5 = arith.constant 5 : index
    %c0_24 = arith.constant 0 : index
    %c0_25 = arith.constant 0 : index
    %61 = vector.load %arg3[%c5, %c0_24, %c0_25] : memref<9x8x4xbf16, #tpu.memory_space<vmem>>, vector<1x8x4xbf16>
    %62 = vector.shape_cast %61 : vector<1x8x4xbf16> to vector<8x4xbf16>
    %63 = arith.truncf %60 : vector<4x256xf32> to vector<4x256xbf16>
    %cst_26 = arith.constant dense<0.000000e+00> : vector<8x256xf32>
    %64 = tpu.matmul %62, %63, %cst_26 {dimension_numbers = #tpu.dot_dimension_numbers<[1], [0], [0], [1], [0, 0, 1, 1], [], []>} : vector<8x4xbf16>, vector<4x256xbf16>, vector<8x256xf32> -> vector<8x256xf32>
    %65 = arith.addf %53, %64 : vector<8x256xf32>
    %66 = vector.extract_strided_slice %1 {offsets = [0, 32], sizes = [4, 256], strides = [1, 1]} : vector<4x384xf32> to vector<4x256xf32>
    %c1_i32_27 = arith.constant 1 : i32
    %67 = vector.broadcast %c1_i32_27 : i32 to vector<1x256xi32>
    %68 = arith.cmpi sge, %4, %67 : vector<1x256xi32>
    %cst_28 = arith.constant 0.000000e+00 : f32
    %69 = vector.broadcast %cst_28 : f32 to vector<4x256xf32>
    %70 = vector.shape_cast %68 : vector<1x256xi1> to vector<1x256xi1>
    %71 = vector.broadcast %70 : vector<1x256xi1> to vector<4x256xi1>
    %72 = arith.select %71, %66, %69 : vector<4x256xi1>, vector<4x256xf32>
    %c6 = arith.constant 6 : index
    %c0_29 = arith.constant 0 : index
    %c0_30 = arith.constant 0 : index
    %73 = vector.load %arg3[%c6, %c0_29, %c0_30] : memref<9x8x4xbf16, #tpu.memory_space<vmem>>, vector<1x8x4xbf16>
    %74 = vector.shape_cast %73 : vector<1x8x4xbf16> to vector<8x4xbf16>
    %75 = arith.truncf %72 : vector<4x256xf32> to vector<4x256xbf16>
    %cst_31 = arith.constant dense<0.000000e+00> : vector<8x256xf32>
    %76 = tpu.matmul %74, %75, %cst_31 {dimension_numbers = #tpu.dot_dimension_numbers<[1], [0], [0], [1], [0, 0, 1, 1], [], []>} : vector<8x4xbf16>, vector<4x256xbf16>, vector<8x256xf32> -> vector<8x256xf32>
    %77 = arith.addf %65, %76 : vector<8x256xf32>
    %78 = vector.extract_strided_slice %1 {offsets = [0, 33], sizes = [4, 256], strides = [1, 1]} : vector<4x384xf32> to vector<4x256xf32>
    %c7 = arith.constant 7 : index
    %c0_32 = arith.constant 0 : index
    %c0_33 = arith.constant 0 : index
    %79 = vector.load %arg3[%c7, %c0_32, %c0_33] : memref<9x8x4xbf16, #tpu.memory_space<vmem>>, vector<1x8x4xbf16>
    %80 = vector.shape_cast %79 : vector<1x8x4xbf16> to vector<8x4xbf16>
    %81 = arith.truncf %78 : vector<4x256xf32> to vector<4x256xbf16>
    %cst_34 = arith.constant dense<0.000000e+00> : vector<8x256xf32>
    %82 = tpu.matmul %80, %81, %cst_34 {dimension_numbers = #tpu.dot_dimension_numbers<[1], [0], [0], [1], [0, 0, 1, 1], [], []>} : vector<8x4xbf16>, vector<4x256xbf16>, vector<8x256xf32> -> vector<8x256xf32>
    %83 = arith.addf %77, %82 : vector<8x256xf32>
    %84 = vector.extract_strided_slice %1 {offsets = [0, 34], sizes = [4, 256], strides = [1, 1]} : vector<4x384xf32> to vector<4x256xf32>
    %c14_i32_35 = arith.constant 14 : i32
    %85 = vector.broadcast %c14_i32_35 : i32 to vector<1x256xi32>
    %86 = arith.cmpi sle, %4, %85 : vector<1x256xi32>
    %cst_36 = arith.constant 0.000000e+00 : f32
    %87 = vector.broadcast %cst_36 : f32 to vector<4x256xf32>
    %88 = vector.shape_cast %86 : vector<1x256xi1> to vector<1x256xi1>
    %89 = vector.broadcast %88 : vector<1x256xi1> to vector<4x256xi1>
    %90 = arith.select %89, %84, %87 : vector<4x256xi1>, vector<4x256xf32>
    %c8 = arith.constant 8 : index
    %c0_37 = arith.constant 0 : index
    %c0_38 = arith.constant 0 : index
    %91 = vector.load %arg3[%c8, %c0_37, %c0_38] : memref<9x8x4xbf16, #tpu.memory_space<vmem>>, vector<1x8x4xbf16>
    %92 = vector.shape_cast %91 : vector<1x8x4xbf16> to vector<8x4xbf16>
    %93 = arith.truncf %90 : vector<4x256xf32> to vector<4x256xbf16>
    %cst_39 = arith.constant dense<0.000000e+00> : vector<8x256xf32>
    %94 = tpu.matmul %92, %93, %cst_39 {dimension_numbers = #tpu.dot_dimension_numbers<[1], [0], [0], [1], [0, 0, 1, 1], [], []>} : vector<8x4xbf16>, vector<4x256xbf16>, vector<8x256xf32> -> vector<8x256xf32>
    %95 = arith.addf %83, %94 : vector<8x256xf32>
    %c0_40 = arith.constant 0 : index
    %c0_41 = arith.constant 0 : index
    %96 = vector.load %arg4[%c0_40, %c0_41] : memref<8x1xf32, #tpu.memory_space<vmem>>, vector<8x1xf32>
    %97 = vector.broadcast %96 : vector<8x1xf32> to vector<8x256xf32>
    %98 = arith.addf %95, %97 : vector<8x256xf32>
    %cst_42 = arith.constant 0.000000e+00 : f32
    %99 = vector.broadcast %cst_42 : f32 to vector<8x256xf32>
    %100 = arith.maximumf %98, %99 : vector<8x256xf32>
    %c0_43 = arith.constant 0 : index
    %c0_44 = arith.constant 0 : index
    %c0_45 = arith.constant 0 : index
    %101 = vector.load %arg5[%c0_43, %c0_44, %c0_45] : memref<1x8x256xf32, #tpu.memory_space<vmem>>, vector<1x8x256xf32>
    %102 = vector.shape_cast %101 : vector<1x8x256xf32> to vector<8x256xf32>
    %103 = vector.shape_cast %100 : vector<8x256xf32> to vector<1x8x256xf32>
    tpu.vector_store %arg5[%c0_43, %c0_44, %c0_45], %103 {strides = array<i32>} : memref<1x8x256xf32, #tpu.memory_space<vmem>>, vector<1x8x256xf32>,
    return
  }
  func.func @transform_0(%arg0: i32, %arg1: i32) -> (i32, i32, i32) {
    %c0_i32 = arith.constant 0 : i32
    %c0_i32_0 = arith.constant 0 : i32
    %c0_i32_1 = arith.constant 0 : i32
    return %arg0, %c0_i32, %c0_i32_0 : i32, i32, i32
  }
  func.func @transform_1(%arg0: i32, %arg1: i32) -> (i32, i32, i32) {
    %c0_i32 = arith.constant 0 : i32
    %c0_i32_0 = arith.constant 0 : i32
    %c0_i32_1 = arith.constant 0 : i32
    return %c0_i32, %arg1, %c0_i32_0 : i32, i32, i32
  }
  func.func @transform_2(%arg0: i32, %arg1: i32) -> (i32, i32) {
    %c0_i32 = arith.constant 0 : i32
    %c0_i32_0 = arith.constant 0 : i32
    return %arg1, %c0_i32 : i32, i32
  }
  func.func @transform_3(%arg0: i32, %arg1: i32) -> (i32, i32, i32) {
    %c0_i32 = arith.constant 0 : i32
    %c0_i32_0 = arith.constant 0 : i32
    return %arg0, %arg1, %c0_i32 : i32, i32, i32
  }
}

module attributes {stable_mosaic.version = 11 : i64} {
  func.func @_projector_kernel(%arg0: i32, %arg1: memref<2x512xf32, #tpu.memory_space<vmem>>, %arg2: memref<512x128xbf16, #tpu.memory_space<vmem>>, %arg3: memref<1x128xf32, #tpu.memory_space<vmem>>, %arg4: memref<1x128xf32, #tpu.memory_space<vmem>>, %arg5: memref<1x128xf32, #tpu.memory_space<vmem>>, %arg6: memref<128x128xf32, #tpu.memory_space<vmem>>, %arg7: memref<1x128xf32, #tpu.memory_space<vmem>>, %arg8: memref<2x128xf32, #tpu.memory_space<vmem>>, %arg9: memref<2x128xf32, #tpu.memory_space<vmem>>) attributes {dimension_semantics = [#tpu.dimension_semantics<arbitrary>], iteration_bounds = array<i64: 4>, scalar_prefetch = 0 : i64, scratch_operands = 1 : i64, tpu.core_type = #tpu.core_type<tc>, window_params = [{transform_indices = @transform_0, window_bounds = array<i64: 2, 512>}, {transform_indices = @transform_1, window_bounds = array<i64: 512, 128>}, {pipeline_mode = #tpu.pipeline_mode<synchronous>, transform_indices = @transform_2, window_bounds = array<i64: 1, 128>}, {pipeline_mode = #tpu.pipeline_mode<synchronous>, transform_indices = @transform_3, window_bounds = array<i64: 1, 128>}, {pipeline_mode = #tpu.pipeline_mode<synchronous>, transform_indices = @transform_4, window_bounds = array<i64: 1, 128>}, {pipeline_mode = #tpu.pipeline_mode<synchronous>, transform_indices = @transform_5, window_bounds = array<i64: 128, 128>}, {pipeline_mode = #tpu.pipeline_mode<synchronous>, transform_indices = @transform_6, window_bounds = array<i64: 1, 128>}, {pipeline_mode = #tpu.pipeline_mode<synchronous>, transform_indices = @transform_7, window_bounds = array<i64: 2, 128>}]} {
    %c0_i32 = arith.constant 0 : i32
    %0 = arith.cmpi eq, %arg0, %c0_i32 : i32
    %1 = arith.extui %0 : i1 to i32
    %c0_i32_0 = arith.constant 0 : i32
    %2 = arith.cmpi ne, %1, %c0_i32_0 : i32
    scf.if %2 {
      %cst_9 = arith.constant 0.000000e+00 : f32
      %13 = vector.broadcast %cst_9 : f32 to vector<2x128xf32>
      %c0_10 = arith.constant 0 : index
      %c0_11 = arith.constant 0 : index
      %14 = vector.load %arg9[%c0_10, %c0_11] : memref<2x128xf32, #tpu.memory_space<vmem>>, vector<2x128xf32>
      tpu.vector_store %arg9[%c0_10, %c0_11], %13 {strides = array<i32>} : memref<2x128xf32, #tpu.memory_space<vmem>>, vector<2x128xf32>,
    } else {
    }
    %c0 = arith.constant 0 : index
    %c0_1 = arith.constant 0 : index
    %3 = vector.load %arg9[%c0, %c0_1] : memref<2x128xf32, #tpu.memory_space<vmem>>, vector<2x128xf32>
    %c0_2 = arith.constant 0 : index
    %c0_3 = arith.constant 0 : index
    %4 = vector.load %arg1[%c0_2, %c0_3] : memref<2x512xf32, #tpu.memory_space<vmem>>, vector<2x512xf32>
    %5 = arith.truncf %4 : vector<2x512xf32> to vector<2x512xbf16>
    %c0_4 = arith.constant 0 : index
    %c0_5 = arith.constant 0 : index
    %6 = vector.load %arg2[%c0_4, %c0_5] : memref<512x128xbf16, #tpu.memory_space<vmem>>, vector<512x128xbf16>
    %cst = arith.constant dense<0.000000e+00> : vector<2x128xf32>
    %7 = tpu.matmul %5, %6, %cst {dimension_numbers = #tpu.dot_dimension_numbers<[1], [0], [0], [1], [0, 0, 1, 1], [], []>} : vector<2x512xbf16>, vector<512x128xbf16>, vector<2x128xf32> -> vector<2x128xf32>
    %8 = arith.addf %3, %7 : vector<2x128xf32>
    %c0_6 = arith.constant 0 : index
    %c0_7 = arith.constant 0 : index
    %9 = vector.load %arg9[%c0_6, %c0_7] : memref<2x128xf32, #tpu.memory_space<vmem>>, vector<2x128xf32>
    tpu.vector_store %arg9[%c0_6, %c0_7], %8 {strides = array<i32>} : memref<2x128xf32, #tpu.memory_space<vmem>>, vector<2x128xf32>,
    %c3_i32 = arith.constant 3 : i32
    %10 = arith.cmpi eq, %arg0, %c3_i32 : i32
    %11 = arith.extui %10 : i1 to i32
    %c0_i32_8 = arith.constant 0 : i32
    %12 = arith.cmpi ne, %11, %c0_i32_8 : i32
    scf.if %12 {
      %c0_9 = arith.constant 0 : index
      %c0_10 = arith.constant 0 : index
      %13 = vector.load %arg9[%c0_9, %c0_10] : memref<2x128xf32, #tpu.memory_space<vmem>>, vector<2x128xf32>
      %c0_11 = arith.constant 0 : index
      %c0_12 = arith.constant 0 : index
      %14 = vector.load %arg3[%c0_11, %c0_12] : memref<1x128xf32, #tpu.memory_space<vmem>>, vector<1x128xf32>
      %15 = vector.broadcast %14 : vector<1x128xf32> to vector<2x128xf32>
      %16 = arith.addf %13, %15 : vector<2x128xf32>
      %cst_13 = arith.constant dense<0.000000e+00> : vector<128xf32>
      %17 = vector.multi_reduction <add>, %16, %cst_13 [0] : vector<2x128xf32> to vector<128xf32>
      %18 = vector.shape_cast %17 : vector<128xf32> to vector<1x128xf32>
      %cst_14 = arith.constant 2.000000e+00 : f32
      %19 = vector.broadcast %cst_14 : f32 to vector<1x128xf32>
      %20 = arith.divf %18, %19 : vector<1x128xf32>
      %21 = vector.broadcast %20 : vector<1x128xf32> to vector<2x128xf32>
      %22 = arith.subf %16, %21 : vector<2x128xf32>
      %23 = arith.mulf %22, %22 : vector<2x128xf32>
      %cst_15 = arith.constant dense<0.000000e+00> : vector<128xf32>
      %24 = vector.multi_reduction <add>, %23, %cst_15 [0] : vector<2x128xf32> to vector<128xf32>
      %25 = vector.shape_cast %24 : vector<128xf32> to vector<1x128xf32>
      %cst_16 = arith.constant 2.000000e+00 : f32
      %26 = vector.broadcast %cst_16 : f32 to vector<1x128xf32>
      %27 = arith.divf %25, %26 : vector<1x128xf32>
      %28 = vector.broadcast %20 : vector<1x128xf32> to vector<2x128xf32>
      %29 = arith.subf %16, %28 : vector<2x128xf32>
      %cst_17 = arith.constant 9.99999974E-6 : f32
      %30 = vector.broadcast %cst_17 : f32 to vector<1x128xf32>
      %31 = arith.addf %27, %30 : vector<1x128xf32>
      %32 = math.rsqrt %31 : vector<1x128xf32>
      %33 = vector.broadcast %32 : vector<1x128xf32> to vector<2x128xf32>
      %34 = arith.mulf %29, %33 : vector<2x128xf32>
      %c0_18 = arith.constant 0 : index
      %c0_19 = arith.constant 0 : index
      %35 = vector.load %arg4[%c0_18, %c0_19] : memref<1x128xf32, #tpu.memory_space<vmem>>, vector<1x128xf32>
      %36 = vector.broadcast %35 : vector<1x128xf32> to vector<2x128xf32>
      %37 = arith.mulf %34, %36 : vector<2x128xf32>
      %c0_20 = arith.constant 0 : index
      %c0_21 = arith.constant 0 : index
      %38 = vector.load %arg5[%c0_20, %c0_21] : memref<1x128xf32, #tpu.memory_space<vmem>>, vector<1x128xf32>
      %39 = vector.broadcast %38 : vector<1x128xf32> to vector<2x128xf32>
      %40 = arith.addf %37, %39 : vector<2x128xf32>
      %cst_22 = arith.constant 0.000000e+00 : f32
      %41 = vector.broadcast %cst_22 : f32 to vector<2x128xf32>
      %42 = arith.maximumf %40, %41 : vector<2x128xf32>
      %c0_23 = arith.constant 0 : index
      %c0_24 = arith.constant 0 : index
      %43 = vector.load %arg6[%c0_23, %c0_24] : memref<128x128xf32, #tpu.memory_space<vmem>>, vector<128x128xf32>
      %cst_25 = arith.constant dense<0.000000e+00> : vector<2x128xf32>
      %44 = tpu.matmul %42, %43, %cst_25 {dimension_numbers = #tpu.dot_dimension_numbers<[1], [0], [0], [1], [0, 0, 1, 1], [], []>} : vector<2x128xf32>, vector<128x128xf32>, vector<2x128xf32> -> vector<2x128xf32>
      %c0_26 = arith.constant 0 : index
      %c0_27 = arith.constant 0 : index
      %45 = vector.load %arg7[%c0_26, %c0_27] : memref<1x128xf32, #tpu.memory_space<vmem>>, vector<1x128xf32>
      %46 = vector.broadcast %45 : vector<1x128xf32> to vector<2x128xf32>
      %47 = arith.addf %44, %46 : vector<2x128xf32>
      %c0_28 = arith.constant 0 : index
      %c0_29 = arith.constant 0 : index
      %48 = vector.load %arg8[%c0_28, %c0_29] : memref<2x128xf32, #tpu.memory_space<vmem>>, vector<2x128xf32>
      tpu.vector_store %arg8[%c0_28, %c0_29], %47 {strides = array<i32>} : memref<2x128xf32, #tpu.memory_space<vmem>>, vector<2x128xf32>,
    } else {
    }
    return
  }
  func.func @transform_0(%arg0: i32) -> (i32, i32) {
    %c0_i32 = arith.constant 0 : i32
    %c0_i32_0 = arith.constant 0 : i32
    return %c0_i32, %arg0 : i32, i32
  }
  func.func @transform_1(%arg0: i32) -> (i32, i32) {
    %c0_i32 = arith.constant 0 : i32
    %c0_i32_0 = arith.constant 0 : i32
    return %arg0, %c0_i32 : i32, i32
  }
  func.func @transform_2(%arg0: i32) -> (i32, i32) {
    %c0_i32 = arith.constant 0 : i32
    %c0_i32_0 = arith.constant 0 : i32
    %c0_i32_1 = arith.constant 0 : i32
    return %c0_i32, %c0_i32_0 : i32, i32
  }
  func.func @transform_3(%arg0: i32) -> (i32, i32) {
    %c0_i32 = arith.constant 0 : i32
    %c0_i32_0 = arith.constant 0 : i32
    %c0_i32_1 = arith.constant 0 : i32
    return %c0_i32, %c0_i32_0 : i32, i32
  }
  func.func @transform_4(%arg0: i32) -> (i32, i32) {
    %c0_i32 = arith.constant 0 : i32
    %c0_i32_0 = arith.constant 0 : i32
    %c0_i32_1 = arith.constant 0 : i32
    return %c0_i32, %c0_i32_0 : i32, i32
  }
  func.func @transform_5(%arg0: i32) -> (i32, i32) {
    %c0_i32 = arith.constant 0 : i32
    %c0_i32_0 = arith.constant 0 : i32
    %c0_i32_1 = arith.constant 0 : i32
    return %c0_i32, %c0_i32_0 : i32, i32
  }
  func.func @transform_6(%arg0: i32) -> (i32, i32) {
    %c0_i32 = arith.constant 0 : i32
    %c0_i32_0 = arith.constant 0 : i32
    %c0_i32_1 = arith.constant 0 : i32
    return %c0_i32, %c0_i32_0 : i32, i32
  }
  func.func @transform_7(%arg0: i32) -> (i32, i32) {
    %c0_i32 = arith.constant 0 : i32
    %c0_i32_0 = arith.constant 0 : i32
    %c0_i32_1 = arith.constant 0 : i32
    return %c0_i32, %c0_i32_0 : i32, i32
  }
}

</mosaic_0001>

<llo_original>
// kernel: netwrapper_forward.2
$region0: #{netwrapper_forward.2}
  #allocation0 [shape = 'u32[]', space=smem, size = 0x4, offset = 0x4, fixed_abs, tag = 'smem constant byte address 0x4 - core index']
  #allocation1 [shape = 'u32[144,128]{1,0:T(1,128)}', space=vmem, size = 0x12000, scoped, tag = 'internal scratch']
  %s0 = inlined_call_operand.vmem [shape: f32[2,4,384], index: 0, kind: input, shape index: {}]
  %s1 = inlined_call_operand.vmem [shape: bf16[9,8,4], index: 1, kind: input, shape index: {}]
  %s2 = inlined_call_operand.vmem [shape: f32[8,1], index: 2, kind: input, shape index: {}]
  %s3 = inlined_call_operand.vmem [shape: f32[2,8,256], index: 3, kind: output, shape index: {}]
  %s4 = sld [smem:[#allocation0]]
  $region45: #{netwrapper_forward.2} parent=0
    _
  %s6 = ssub.s32 1, %s4
  %s7 = scalar_select 0, %s6, %s4
  loop: start=0, step=1, limit=4
  $region2: #{netwrapper_forward.2} parent=0 // loop_pre_header
    _
  $region3: #{netwrapper_forward.2} parent=0 // loop_header
    %s9 = sphi 0, %s13
    %p10 = scmp.ge.s32.totalorder %s9, 4
    %s16 = sphi 0, %s28
    %s17 = sphi 0, %s24
    %s18 = sphi 0, %s16
    %s19 = sphi 0, %s17
    %s20 = sphi 0, %s18
    %s21 = sphi 0, %s19
    %s31 = sphi 0, %s33
    %s34 = sphi 0, %s31
    %s35 = sphi 0, %s34
    %s51 = sphi 0, %s35
    %s57 = sphi 0, %s59
    %s60 = sphi 0, %s57
    %s61 = sphi 0, %s60
    %s77 = sphi 0, %s61
    %s83 = sphi 0, %s85
    %s86 = sphi 0, %s83
    %s87 = sphi 0, %s86
    %s103 = sphi 0, %s87
    %s111 = sphi 0, %s113
    %s114 = sphi 0, %s111
    %s115 = sphi 0, %s114
    %s131 = sphi 0, %s115
  $region4: #{netwrapper_forward.2} parent=0 // loop_header_branch
    %12 = sbr.rel (%p10) target = $region8
  $region5: #{netwrapper_forward.2} parent=0 // loop_body
    %s14 = ssub.s32 %s9, 1
    %s15 = ssub.s32 %s9, 2
    %s22 = sadd.s32 1, %s17
    %p23 = scmp.ge.s32.totalorder %s22, 1
    %s24 = scalar_select %p23, 0, %s22
    %s25 = sadd.s32 1, %s16
    %s26 = scalar_select %p23, %s25, %s16
    %p27 = scmp.ge.s32.totalorder %s26, 2
    %s28 = scalar_select %p27, 0, %s26
    %s29 = ssub.s32 %s16, %s28
    %p30 = scmp.eq.s32.totalorder %s29, 0
    %s32 = sadd.s32 %s31, 1
    %s33 = scalar_select %p30, %s31, %s32
    %p36 = pneg %p30
    %p37 = scmp.eq.s32.totalorder %s9, 1
    %p38 = por %p36, %p37
    %p39 = scmp.ne.s32.totalorder %s31, %s34
    %p40 = scmp.eq.s32.totalorder %s9, 0
    %p41 = por %p39, %p40
    %p42 = scmp.ne.s32.totalorder %s31, %s34
    %p43 = scmp.eq.s32.totalorder %s14, 1
    %p44 = por %p42, %p43
    %p45 = scmp.ne.s32.totalorder %s34, %s35
    %p46 = scmp.eq.s32.totalorder %s14, 0
    %p47 = por %p45, %p46
    %p48 = scmp.ne.s32.totalorder %s34, %s35
    %p49 = scmp.eq.s32.totalorder %s15, 1
    %p50 = por %p48, %p49
    %p52 = scmp.ne.s32.totalorder %s35, %s51
    %p53 = scmp.eq.s32.totalorder %s15, 0
    %p54 = por %p52, %p53
    %s55 = ssub.s32 %s17, %s24
    %p56 = scmp.eq.s32.totalorder %s55, 0
    %s58 = sadd.s32 %s57, 1
    %s59 = scalar_select %p56, %s57, %s58
    %p62 = pneg %p56
    %p63 = scmp.eq.s32.totalorder %s9, 1
    %p64 = por %p62, %p63
    %p65 = scmp.ne.s32.totalorder %s57, %s60
    %p66 = scmp.eq.s32.totalorder %s9, 0
    %p67 = por %p65, %p66
    %p68 = scmp.ne.s32.totalorder %s57, %s60
    %p69 = scmp.eq.s32.totalorder %s14, 1
    %p70 = por %p68, %p69
    %p71 = scmp.ne.s32.totalorder %s60, %s61
    %p72 = scmp.eq.s32.totalorder %s14, 0
    %p73 = por %p71, %p72
    %p74 = scmp.ne.s32.totalorder %s60, %s61
    %p75 = scmp.eq.s32.totalorder %s15, 1
    %p76 = por %p74, %p75
    %p78 = scmp.ne.s32.totalorder %s61, %s77
    %p79 = scmp.eq.s32.totalorder %s15, 0
    %p80 = por %p78, %p79
    %s81 = ssub.s32 %s17, %s24
    %p82 = scmp.eq.s32.totalorder %s81, 0
    %s84 = sadd.s32 %s83, 1
    %s85 = scalar_select %p82, %s83, %s84
    %p88 = pneg %p82
    %p89 = scmp.eq.s32.totalorder %s9, 1
    %p90 = por %p88, %p89
    %p91 = scmp.ne.s32.totalorder %s83, %s86
    %p92 = scmp.eq.s32.totalorder %s9, 0
    %p93 = por %p91, %p92
    %p94 = scmp.ne.s32.totalorder %s83, %s86
    %p95 = scmp.eq.s32.totalorder %s14, 1
    %p96 = por %p94, %p95
    %p97 = scmp.ne.s32.totalorder %s86, %s87
    %p98 = scmp.eq.s32.totalorder %s14, 0
    %p99 = por %p97, %p98
    %p100 = scmp.ne.s32.totalorder %s86, %s87
    %p101 = scmp.eq.s32.totalorder %s15, 1
    %p102 = por %p100, %p101
    %p104 = scmp.ne.s32.totalorder %s87, %s103
    %p105 = scmp.eq.s32.totalorder %s15, 0
    %p106 = por %p104, %p105
    %s107 = ssub.s32 %s16, %s28
    %s108 = ssub.s32 %s17, %s24
    %s109 = sor.u32 %s107, %s108
    %p110 = scmp.eq.s32.totalorder %s109, 0
    %s112 = sadd.s32 %s111, 1
    %s113 = scalar_select %p110, %s111, %s112
    %p116 = pneg %p110
    %p117 = scmp.eq.s32.totalorder %s9, 1
    %p118 = por %p116, %p117
    %p119 = scmp.ne.s32.totalorder %s111, %s114
    %p120 = scmp.eq.s32.totalorder %s9, 0
    %p121 = por %p119, %p120
    %p122 = scmp.ne.s32.totalorder %s111, %s114
    %p123 = scmp.eq.s32.totalorder %s14, 1
    %p124 = por %p122, %p123
    %p125 = scmp.ne.s32.totalorder %s114, %s115
    %p126 = scmp.eq.s32.totalorder %s14, 0
    %p127 = por %p125, %p126
    %p128 = scmp.ne.s32.totalorder %s114, %s115
    %p129 = scmp.eq.s32.totalorder %s15, 1
    %p130 = por %p128, %p129
    %p132 = scmp.ne.s32.totalorder %s115, %s131
    %p133 = scmp.eq.s32.totalorder %s15, 0
    %p134 = por %p132, %p133
    %p135 = scmp.le.s32.totalorder 1, %s9
    %p136 = scmp.lt.s32.totalorder %s9, 3
    %p137 = pnand %p135, %p136
    %p138 = pneg %p137
    // Predicated region
    $region9: #{netwrapper_forward.2} parent=5 // pred_check
      _
    $region10: #{netwrapper_forward.2} parent=5 // pred_check_branch
      %140 = sbr.rel (%p137) target = $region12
    $region11: #{netwrapper_forward.2} parent=5 // pred_region
      %s141 = ssub.s32 %s9, 1
      // Predicated region
      $region13: #{netwrapper_forward.2} parent=11 // pred_check
        %p142 = pneg %p73
      $region14: #{netwrapper_forward.2} parent=11 // pred_check_branch
        %144 = sbr.rel (%p142) target = $region16
      $region15: #{netwrapper_forward.2} parent=11 // pred_region
        %p145 = scmp.lt.s32.totalorder %s19, 0
        %s146 = scalar_select %p145, %s19, 0
        %s147 = smul.addr %s146, 4
        %s148 = scalar_lea.vmem %s1, %s147
      $region16: #{netwrapper_forward.2} parent=11 // pred_fallthru
        _
      // Predicated region
      $region17: #{netwrapper_forward.2} parent=11 // pred_check
        %p149 = pneg %p99
      $region18: #{netwrapper_forward.2} parent=11 // pred_check_branch
        %151 = sbr.rel (%p149) target = $region20
      $region19: #{netwrapper_forward.2} parent=11 // pred_region
        %p152 = scmp.lt.s32.totalorder %s19, 0
        %s153 = scalar_select %p152, %s19, 0
        %s154 = smul.addr %s153, 8
        %s155 = scalar_lea.vmem %s2, %s154
      $region20: #{netwrapper_forward.2} parent=11 // pred_fallthru
        _
    $region12: #{netwrapper_forward.2} parent=5 // pred_fallthru
      _
    %p156 = scmp.lt.s32.totalorder %s9, 2
    // Predicated region
    $region21: #{netwrapper_forward.2} parent=5 // pred_check
      %p157 = pneg %p156
    $region22: #{netwrapper_forward.2} parent=5 // pred_check_branch
      %159 = sbr.rel (%p157) target = $region24
    $region23: #{netwrapper_forward.2} parent=5 // pred_region
      // Predicated region
      $region25: #{netwrapper_forward.2} parent=23 // pred_check
        %p160 = pneg %p41
      $region26: #{netwrapper_forward.2} parent=23 // pred_check_branch
        %162 = sbr.rel (%p160) target = $region28
      $region27: #{netwrapper_forward.2} parent=23 // pred_region
        %p163 = scmp.lt.s32.totalorder %s16, 1
        %s164 = scalar_select %p163, %s16, 1
        %s165 = smul.addr %s164, 3
        %s166 = smul.addr %s165, 4
        %s167 = scalar_lea.vmem %s0, %s166
      $region28: #{netwrapper_forward.2} parent=23 // pred_fallthru
        _
    $region24: #{netwrapper_forward.2} parent=5 // pred_fallthru
      _
    %p168 = scmp.le.s32.totalorder 1, %s9
    %p169 = scmp.lt.s32.totalorder %s9, 3
    %p170 = pnand %p168, %p169
    %p171 = pneg %p170
    // Predicated region
    $region29: #{netwrapper_forward.2} parent=5 // pred_check
      _
    $region30: #{netwrapper_forward.2} parent=5 // pred_check_branch
      %173 = sbr.rel (%p170) target = $region32
    $region31: #{netwrapper_forward.2} parent=5 // pred_region
      %s174 = ssub.s32 %s9, 1
      %p175 = scmp.lt.s32.totalorder %s18, 1
      %s176 = scalar_select %p175, %s18, 1
      %s177 = smul.addr %s176, 3
      %s178 = smul.addr %s177, 4
      %s179 = scalar_lea.vmem %s0, %s178
      %p180 = pneg %p47
      %p181 = pneg %p44
      %p182 = scmp.lt.s32.totalorder %s19, 0
      %s183 = scalar_select %p182, %s19, 0
      %s184 = smul.addr %s183, 4
      %s185 = scalar_lea.vmem %s1, %s184
      %p186 = pneg %p73
      %p187 = pneg %p70
      %p188 = scmp.lt.s32.totalorder %s19, 0
      %s189 = scalar_select %p188, %s19, 0
      %s190 = smul.addr %s189, 8
      %s191 = scalar_lea.vmem %s2, %s190
      %p192 = pneg %p99
      %p193 = pneg %p96
      %p194 = pneg %p127
      %p195 = pneg %p124
      %p196 = scmp.lt.s32.totalorder %s18, 1
      %s197 = scalar_select %p196, %s18, 1
      %p198 = scmp.lt.s32.totalorder %s19, 0
      %s199 = scalar_select %p198, %s19, 0
      %s200 = smul.addr %s199, 2
      %s201 = smul.addr %s197, 2
      %s202 = sadd.s32 %s200, %s201
      %s203 = smul.addr %s202, 8
      %s204 = scalar_lea.vmem %s3, %s203
      %p205 = scmp.lt.s32.totalorder %s18, 1
      %s206 = scalar_select %p205, %s18, 1
      %s207 = smul.addr %s206, 3
      %s208 = smul.addr %s207, 4
      %s209 = scalar_lea.vmem %s0, %s208
      %p210 = scmp.lt.s32.totalorder %s19, 0
      %s211 = scalar_select %p210, %s19, 0
      %s212 = smul.addr %s211, 4
      %s213 = scalar_lea.vmem %s1, %s212
      %p214 = scmp.lt.s32.totalorder %s19, 0
      %s215 = scalar_select %p214, %s19, 0
      %s216 = smul.addr %s215, 8
      %s217 = scalar_lea.vmem %s2, %s216
      %p218 = scmp.lt.s32.totalorder %s18, 1
      %s219 = scalar_select %p218, %s18, 1
      %p220 = scmp.lt.s32.totalorder %s19, 0
      %s221 = scalar_select %p220, %s19, 0
      %s222 = smul.addr %s221, 2
      %s223 = smul.addr %s219, 2
      %s224 = sadd.s32 %s222, %s223
      %s225 = smul.addr %s224, 8
      %s226 = scalar_lea.vmem %s3, %s225
      %v228 = vld [vmem:[%s209] sm:$0xff]
      %v229 = vld [vmem:[%s209 + $0x8] sm:$0xf]
      %v230 = vlaneseq
      %v231 = vand.u32 %v230, 127
      %v232 = vadd.s32 %v231, 128
      %v233 = vand.u32 %v231, 15
      %v234 = vand.u32 %v232, 15
      %vm235 = vcmp.ge.s32.totalorder %v233, 1
      %vm236 = vcmp.ge.s32.totalorder %v234, 1
      %v237 = vsel %vm235, 1, 0
      %v238 = vsel %vm236, 1, 0
      %vm239 = vcmp.eq.s32.totalorder %v237, 1
      %vm240 = vcmp.eq.s32.totalorder %v238, 1
      %v242 = vcombine.high %v228, %v228
      %v244 = vsel %vm239, %v228, 0.0
      %v245 = vsel %vm240, %v242, 0.0
      %v246 = vld [vmem:[%s213] sm:$0xf]
      %v247 = vpack.c.bf16 %v244, %v244
      %v248 = vpack.c.bf16 %v245, %v245
      %s249 = scalar_lea.vmem %s213, 4
      %v250 = vld [vmem:[%s249] sm:$0xf]
      %v252 = vpack.c.bf16 %v228, %v228
      %v253 = vpack.c.bf16 %v242, %v242
      %v254 = vpack.c.bf16 %v229, %v229
      %258 = vrot.lane.b32.xlu0 %v252, 127
      %v259 = vpop.permute.xlu0 %258
      %260 = vrot.lane.b32.xlu0 %v253, 127
      %v261 = vpop.permute.xlu0 %260
      %262 = vrot.lane.b32.xlu0 %v254, 127
      %v263 = vpop.permute.xlu0 %262
      %vm264 = vcmask 1039360
      %v265 = vsel %vm264, %v259, %v261
      %v266 = vsel %vm264, %v261, %v263
      %vm267 = vcmask 31744
      %v269 = vsel %vm267, %v250, 0
      %vm271 = vcmask 1041408
      %v273 = vsel %vm271, %v265, 0
      %v276 = vsel %vm271, %v266, 0
      %278 = vmatprep.subr.bf16.mxu0 0
      %279 = vmatpush1.bf16.msra.mxu0 0
      %280 = vmatprep.subr.bf16.mxu0 0
      %281 = vmatpush1.bf16.msra.mxu0 0
      %282 = vmatprep.subr.bf16.mxu0 0
      %283 = vmatpush1.bf16.msra.mxu0 0
      %284 = vmatprep.subr.bf16.mxu0 0
      %285 = vmatpush1.bf16.msra.mxu0 0
      %286 = vmatprep.subr.bf16.mxu0 0
      %287 = vmatpush1.bf16.msra.mxu0 0
      %288 = vmatprep.subr.bf16.mxu0 0
      %289 = vmatpush1.bf16.msra.mxu0 0
      %290 = vmatprep.subr.bf16.mxu0 0
      %291 = vmatpush1.bf16.msra.mxu0 0
      %292 = vmatprep.subr.bf16.mxu0 %v276
      %293 = vmatpush1.bf16.msra.mxu0 %v273
      %294 = vmatprep.subr.bf16.mxu0 0
      %295 = vmatpush2.bf16.msra.mxu0 0
      %296 = vmatprep.subr.bf16.mxu0 0
      %297 = vmatpush2.bf16.msra.mxu0 0
      %298 = vmatprep.subr.bf16.mxu0 0
      %299 = vmatpush2.bf16.msra.mxu0 0
      %300 = vmatprep.subr.bf16.mxu0 0
      %301 = vmatpush2.bf16.msra.mxu0 0
      %302 = vmatprep.subr.bf16.mxu0 0
      %303 = vmatpush2.bf16.msra.mxu0 0
      %304 = vmatprep.subr.bf16.mxu0 0
      %305 = vmatpush2.bf16.msra.mxu0 0
      %306 = vmatprep.subr.bf16.mxu0 0
      %307 = vmatpush2.bf16.msra.mxu0 0
      %308 = vmatprep.subr.bf16.mxu0 0
      %309 = vmatpush2.bf16.msra.mxu0 0
      %310 = vmatprep.mubr.bf16.mxu0 0
      %311 = vmatmul.mubr.bf16.gmra.mxu0 %v269
      %v312 = vpop.f32.mrf.mxu0
      %v313 = vadd.f32 0.0, %v312
      %v314 = vpop.f32.mrf.mxu0
      %v315 = vadd.f32 0.0, %v314
      %v316 = vpop.f32.mrf.mxu0
      %v317 = vpop.f32.mrf.mxu0
      %318 = vdwg.mxu0
      %v320 = vsel %vm267, %v246, 0
      %v323 = vsel %vm271, %v247, 0
      %v326 = vsel %vm271, %v248, 0
      %328 = vmatprep.subr.bf16.mxu0 0
      %329 = vmatpush1.bf16.msra.mxu0 0
      %330 = vmatprep.subr.bf16.mxu0 0
      %331 = vmatpush1.bf16.msra.mxu0 0
      %332 = vmatprep.subr.bf16.mxu0 0
      %333 = vmatpush1.bf16.msra.mxu0 0
      %334 = vmatprep.subr.bf16.mxu0 0
      %335 = vmatpush1.bf16.msra.mxu0 0
      %336 = vmatprep.subr.bf16.mxu0 0
      %337 = vmatpush1.bf16.msra.mxu0 0
      %338 = vmatprep.subr.bf16.mxu0 0
      %339 = vmatpush1.bf16.msra.mxu0 0
      %340 = vmatprep.subr.bf16.mxu0 0
      %341 = vmatpush1.bf16.msra.mxu0 0
      %342 = vmatprep.subr.bf16.mxu0 %v326
      %343 = vmatpush1.bf16.msra.mxu0 %v323
      %344 = vmatprep.subr.bf16.mxu0 0
      %345 = vmatpush2.bf16.msra.mxu0 0
      %346 = vmatprep.subr.bf16.mxu0 0
      %347 = vmatpush2.bf16.msra.mxu0 0
      %348 = vmatprep.subr.bf16.mxu0 0
      %349 = vmatpush2.bf16.msra.mxu0 0
      %350 = vmatprep.subr.bf16.mxu0 0
      %351 = vmatpush2.bf16.msra.mxu0 0
      %352 = vmatprep.subr.bf16.mxu0 0
      %353 = vmatpush2.bf16.msra.mxu0 0
      %354 = vmatprep.subr.bf16.mxu0 0
      %355 = vmatpush2.bf16.msra.mxu0 0
      %356 = vmatprep.subr.bf16.mxu0 0
      %357 = vmatpush2.bf16.msra.mxu0 0
      %358 = vmatprep.subr.bf16.mxu0 0
      %359 = vmatpush2.bf16.msra.mxu0 0
      %360 = vmatprep.mubr.bf16.mxu0 0
      %361 = vmatmul.mubr.bf16.gmra.mxu0 %v320
      %v362 = vpop.f32.mrf.mxu0
      %v363 = vadd.f32 %v313, %v362
      %v364 = vpop.f32.mrf.mxu0
      %v365 = vadd.f32 %v315, %v364
      %v366 = vpop.f32.mrf.mxu0
      %v367 = vpop.f32.mrf.mxu0
      %368 = vdwg.mxu0
      %vm369 = vcmp.le.s32.totalorder %v233, 14
      %vm370 = vcmp.le.s32.totalorder %v234, 14
      %v371 = vsel %vm369, 1, 0
      %v372 = vsel %vm370, 1, 0
      %vm373 = vcmp.eq.s32.totalorder %v371, 1
      %vm374 = vcmp.eq.s32.totalorder %v372, 1
      %375 = vrot.lane.b32.xlu0 %v228, 126
      %v376 = vpop.permute.xlu0 %375
      %377 = vrot.lane.b32.xlu0 %v242, 126
      %v378 = vpop.permute.xlu0 %377
      %379 = vrot.lane.b32.xlu0 %v229, 126
      %v380 = vpop.permute.xlu0 %379
      %vm381 = vcmask 1031168
      %v382 = vsel %vm381, %v376, %v378
      %v383 = vsel %vm381, %v378, %v380
      %v386 = vsel %vm373, %v382, 0.0
      %v387 = vsel %vm374, %v383, 0.0
      %s388 = scalar_lea.vmem %s213, 8
      %v389 = vld [vmem:[%s388] sm:$0xf]
      %v390 = vpack.c.bf16 %v386, %v386
      %v391 = vpack.c.bf16 %v387, %v387
      %v393 = vsel %vm267, %v389, 0
      %v396 = vsel %vm271, %v390, 0
      %v399 = vsel %vm271, %v391, 0
      %401 = vmatprep.subr.bf16.mxu0 0
      %402 = vmatpush1.bf16.msra.mxu0 0
      %403 = vmatprep.subr.bf16.mxu0 0
      %404 = vmatpush1.bf16.msra.mxu0 0
      %405 = vmatprep.subr.bf16.mxu0 0
      %406 = vmatpush1.bf16.msra.mxu0 0
      %407 = vmatprep.subr.bf16.mxu0 0
      %408 = vmatpush1.bf16.msra.mxu0 0
      %409 = vmatprep.subr.bf16.mxu0 0
      %410 = vmatpush1.bf16.msra.mxu0 0
      %411 = vmatprep.subr.bf16.mxu0 0
      %412 = vmatpush1.bf16.msra.mxu0 0
      %413 = vmatprep.subr.bf16.mxu0 0
      %414 = vmatpush1.bf16.msra.mxu0 0
      %415 = vmatprep.subr.bf16.mxu0 %v399
      %416 = vmatpush1.bf16.msra.mxu0 %v396
      %417 = vmatprep.subr.bf16.mxu0 0
      %418 = vmatpush2.bf16.msra.mxu0 0
      %419 = vmatprep.subr.bf16.mxu0 0
      %420 = vmatpush2.bf16.msra.mxu0 0
      %421 = vmatprep.subr.bf16.mxu0 0
      %422 = vmatpush2.bf16.msra.mxu0 0
      %423 = vmatprep.subr.bf16.mxu0 0
      %424 = vmatpush2.bf16.msra.mxu0 0
      %425 = vmatprep.subr.bf16.mxu0 0
      %426 = vmatpush2.bf16.msra.mxu0 0
      %427 = vmatprep.subr.bf16.mxu0 0
      %428 = vmatpush2.bf16.msra.mxu0 0
      %429 = vmatprep.subr.bf16.mxu0 0
      %430 = vmatpush2.bf16.msra.mxu0 0
      %431 = vmatprep.subr.bf16.mxu0 0
      %432 = vmatpush2.bf16.msra.mxu0 0
      %433 = vmatprep.mubr.bf16.mxu0 0
      %434 = vmatmul.mubr.bf16.gmra.mxu0 %v393
      %v435 = vpop.f32.mrf.mxu0
      %v436 = vadd.f32 0.0, %v435
      %v437 = vpop.f32.mrf.mxu0
      %v438 = vadd.f32 0.0, %v437
      %v439 = vpop.f32.mrf.mxu0
      %v440 = vpop.f32.mrf.mxu0
      %441 = vdwg.mxu0
      %v442 = vadd.f32 %v363, %v436
      %v443 = vadd.f32 %v365, %v438
      %444 = vrot.lane.b32.xlu0 %v228, 112
      %v445 = vpop.permute.xlu0 %444
      %446 = vrot.lane.b32.xlu0 %v242, 112
      %v447 = vpop.permute.xlu0 %446
      %448 = vrot.lane.b32.xlu0 %v229, 112
      %v449 = vpop.permute.xlu0 %448
      %vm450 = vcmask 916480
      %v451 = vsel %vm450, %v445, %v447
      %v452 = vsel %vm450, %v447, %v449
      %v455 = vsel %vm239, %v451, 0.0
      %v456 = vsel %vm240, %v452, 0.0
      %s457 = scalar_lea.vmem %s213, 12
      %v458 = vld [vmem:[%s457] sm:$0xf]
      %v459 = vpack.c.bf16 %v455, %v455
      %v460 = vpack.c.bf16 %v456, %v456
      %v462 = vsel %vm267, %v458, 0
      %v465 = vsel %vm271, %v459, 0
      %v468 = vsel %vm271, %v460, 0
      %470 = vmatprep.subr.bf16.mxu0 0
      %471 = vmatpush1.bf16.msra.mxu0 0
      %472 = vmatprep.subr.bf16.mxu0 0
      %473 = vmatpush1.bf16.msra.mxu0 0
      %474 = vmatprep.subr.bf16.mxu0 0
      %475 = vmatpush1.bf16.msra.mxu0 0
      %476 = vmatprep.subr.bf16.mxu0 0
      %477 = vmatpush1.bf16.msra.mxu0 0
      %478 = vmatprep.subr.bf16.mxu0 0
      %479 = vmatpush1.bf16.msra.mxu0 0
      %480 = vmatprep.subr.bf16.mxu0 0
      %481 = vmatpush1.bf16.msra.mxu0 0
      %482 = vmatprep.subr.bf16.mxu0 0
      %483 = vmatpush1.bf16.msra.mxu0 0
      %484 = vmatprep.subr.bf16.mxu0 %v468
      %485 = vmatpush1.bf16.msra.mxu0 %v465
      %486 = vmatprep.subr.bf16.mxu0 0
      %487 = vmatpush2.bf16.msra.mxu0 0
      %488 = vmatprep.subr.bf16.mxu0 0
      %489 = vmatpush2.bf16.msra.mxu0 0
      %490 = vmatprep.subr.bf16.mxu0 0
      %491 = vmatpush2.bf16.msra.mxu0 0
      %492 = vmatprep.subr.bf16.mxu0 0
      %493 = vmatpush2.bf16.msra.mxu0 0
      %494 = vmatprep.subr.bf16.mxu0 0
      %495 = vmatpush2.bf16.msra.mxu0 0
      %496 = vmatprep.subr.bf16.mxu0 0
      %497 = vmatpush2.bf16.msra.mxu0 0
      %498 = vmatprep.subr.bf16.mxu0 0
      %499 = vmatpush2.bf16.msra.mxu0 0
      %500 = vmatprep.subr.bf16.mxu0 0
      %501 = vmatpush2.bf16.msra.mxu0 0
      %502 = vmatprep.mubr.bf16.mxu0 0
      %503 = vmatmul.mubr.bf16.gmra.mxu0 %v462
      %v504 = vpop.f32.mrf.mxu0
      %v505 = vadd.f32 0.0, %v504
      %v506 = vpop.f32.mrf.mxu0
      %v507 = vadd.f32 0.0, %v506
      %v508 = vpop.f32.mrf.mxu0
      %v509 = vpop.f32.mrf.mxu0
      %510 = vdwg.mxu0
      %v511 = vadd.f32 %v442, %v505
      %v512 = vadd.f32 %v443, %v507
      %s513 = scalar_lea.vmem %s213, 16
      %v514 = vld [vmem:[%s513] sm:$0xf]
      %515 = vrot.lane.b32.xlu0 %v252, 111
      %v516 = vpop.permute.xlu0 %515
      %517 = vrot.lane.b32.xlu0 %v253, 111
      %v518 = vpop.permute.xlu0 %517
      %519 = vrot.lane.b32.xlu0 %v254, 111
      %v520 = vpop.permute.xlu0 %519
      %vm521 = vcmask 908288
      %v522 = vsel %vm521, %v516, %v518
      %v523 = vsel %vm521, %v518, %v520
      %v525 = vsel %vm267, %v514, 0
      %v528 = vsel %vm271, %v522, 0
      %v531 = vsel %vm271, %v523, 0
      %533 = vmatprep.subr.bf16.mxu0 0
      %534 = vmatpush1.bf16.msra.mxu0 0
      %535 = vmatprep.subr.bf16.mxu0 0
      %536 = vmatpush1.bf16.msra.mxu0 0
      %537 = vmatprep.subr.bf16.mxu0 0
      %538 = vmatpush1.bf16.msra.mxu0 0
      %539 = vmatprep.subr.bf16.mxu0 0
      %540 = vmatpush1.bf16.msra.mxu0 0
      %541 = vmatprep.subr.bf16.mxu0 0
      %542 = vmatpush1.bf16.msra.mxu0 0
      %543 = vmatprep.subr.bf16.mxu0 0
      %544 = vmatpush1.bf16.msra.mxu0 0
      %545 = vmatprep.subr.bf16.mxu0 0
      %546 = vmatpush1.bf16.msra.mxu0 0
      %547 = vmatprep.subr.bf16.mxu0 %v531
      %548 = vmatpush1.bf16.msra.mxu0 %v528
      %549 = vmatprep.subr.bf16.mxu0 0
      %550 = vmatpush2.bf16.msra.mxu0 0
      %551 = vmatprep.subr.bf16.mxu0 0
      %552 = vmatpush2.bf16.msra.mxu0 0
      %553 = vmatprep.subr.bf16.mxu0 0
      %554 = vmatpush2.bf16.msra.mxu0 0
      %555 = vmatprep.subr.bf16.mxu0 0
      %556 = vmatpush2.bf16.msra.mxu0 0
      %557 = vmatprep.subr.bf16.mxu0 0
      %558 = vmatpush2.bf16.msra.mxu0 0
      %559 = vmatprep.subr.bf16.mxu0 0
      %560 = vmatpush2.bf16.msra.mxu0 0
      %561 = vmatprep.subr.bf16.mxu0 0
      %562 = vmatpush2.bf16.msra.mxu0 0
      %563 = vmatprep.subr.bf16.mxu0 0
      %564 = vmatpush2.bf16.msra.mxu0 0
      %565 = vmatprep.mubr.bf16.mxu0 0
      %566 = vmatmul.mubr.bf16.gmra.mxu0 %v525
      %v567 = vpop.f32.mrf.mxu0
      %v568 = vadd.f32 0.0, %v567
      %v569 = vpop.f32.mrf.mxu0
      %v570 = vadd.f32 0.0, %v569
      %v571 = vpop.f32.mrf.mxu0
      %v572 = vpop.f32.mrf.mxu0
      %573 = vdwg.mxu0
      %v574 = vadd.f32 %v511, %v568
      %v575 = vadd.f32 %v512, %v570
      %576 = vrot.lane.b32.xlu0 %v228, 110
      %v577 = vpop.permute.xlu0 %576
      %578 = vrot.lane.b32.xlu0 %v242, 110
      %v579 = vpop.permute.xlu0 %578
      %580 = vrot.lane.b32.xlu0 %v229, 110
      %v581 = vpop.permute.xlu0 %580
      %vm582 = vcmask 900096
      %v583 = vsel %vm582, %v577, %v579
      %v584 = vsel %vm582, %v579, %v581
      %v587 = vsel %vm373, %v583, 0.0
      %v588 = vsel %vm374, %v584, 0.0
      %s589 = scalar_lea.vmem %s213, 20
      %v590 = vld [vmem:[%s589] sm:$0xf]
      %v591 = vpack.c.bf16 %v587, %v587
      %v592 = vpack.c.bf16 %v588, %v588
      %v594 = vsel %vm267, %v590, 0
      %v597 = vsel %vm271, %v591, 0
      %v600 = vsel %vm271, %v592, 0
      %602 = vmatprep.subr.bf16.mxu0 0
      %603 = vmatpush1.bf16.msra.mxu0 0
      %604 = vmatprep.subr.bf16.mxu0 0
      %605 = vmatpush1.bf16.msra.mxu0 0
      %606 = vmatprep.subr.bf16.mxu0 0
      %607 = vmatpush1.bf16.msra.mxu0 0
      %608 = vmatprep.subr.bf16.mxu0 0
      %609 = vmatpush1.bf16.msra.mxu0 0
      %610 = vmatprep.subr.bf16.mxu0 0
      %611 = vmatpush1.bf16.msra.mxu0 0
      %612 = vmatprep.subr.bf16.mxu0 0
      %613 = vmatpush1.bf16.msra.mxu0 0
      %614 = vmatprep.subr.bf16.mxu0 0
      %615 = vmatpush1.bf16.msra.mxu0 0
      %616 = vmatprep.subr.bf16.mxu0 %v600
      %617 = vmatpush1.bf16.msra.mxu0 %v597
      %618 = vmatprep.subr.bf16.mxu0 0
      %619 = vmatpush2.bf16.msra.mxu0 0
      %620 = vmatprep.subr.bf16.mxu0 0
      %621 = vmatpush2.bf16.msra.mxu0 0
      %622 = vmatprep.subr.bf16.mxu0 0
      %623 = vmatpush2.bf16.msra.mxu0 0
      %624 = vmatprep.subr.bf16.mxu0 0
      %625 = vmatpush2.bf16.msra.mxu0 0
      %626 = vmatprep.subr.bf16.mxu0 0
      %627 = vmatpush2.bf16.msra.mxu0 0
      %628 = vmatprep.subr.bf16.mxu0 0
      %629 = vmatpush2.bf16.msra.mxu0 0
      %630 = vmatprep.subr.bf16.mxu0 0
      %631 = vmatpush2.bf16.msra.mxu0 0
      %632 = vmatprep.subr.bf16.mxu0 0
      %633 = vmatpush2.bf16.msra.mxu0 0
      %634 = vmatprep.mubr.bf16.mxu0 0
      %635 = vmatmul.mubr.bf16.gmra.mxu0 %v594
      %v636 = vpop.f32.mrf.mxu0
      %v637 = vadd.f32 0.0, %v636
      %v638 = vpop.f32.mrf.mxu0
      %v639 = vadd.f32 0.0, %v638
      %v640 = vpop.f32.mrf.mxu0
      %v641 = vpop.f32.mrf.mxu0
      %642 = vdwg.mxu0
      %v643 = vadd.f32 %v574, %v637
      %v644 = vadd.f32 %v575, %v639
      %645 = vrot.lane.b32.xlu0 %v228, 96
      %v646 = vpop.permute.xlu0 %645
      %647 = vrot.lane.b32.xlu0 %v242, 96
      %v648 = vpop.permute.xlu0 %647
      %649 = vrot.lane.b32.xlu0 %v229, 96
      %v650 = vpop.permute.xlu0 %649
      %vm651 = vcmask 785408
      %v652 = vsel %vm651, %v646, %v648
      %v653 = vsel %vm651, %v648, %v650
      %v656 = vsel %vm239, %v652, 0.0
      %v657 = vsel %vm240, %v653, 0.0
      %s658 = scalar_lea.vmem %s213, 24
      %v659 = vld [vmem:[%s658] sm:$0xf]
      %v660 = vpack.c.bf16 %v656, %v656
      %v661 = vpack.c.bf16 %v657, %v657
      %v663 = vsel %vm267, %v659, 0
      %v666 = vsel %vm271, %v660, 0
      %v669 = vsel %vm271, %v661, 0
      %671 = vmatprep.subr.bf16.mxu0 0
      %672 = vmatpush1.bf16.msra.mxu0 0
      %673 = vmatprep.subr.bf16.mxu0 0
      %674 = vmatpush1.bf16.msra.mxu0 0
      %675 = vmatprep.subr.bf16.mxu0 0
      %676 = vmatpush1.bf16.msra.mxu0 0
      %677 = vmatprep.subr.bf16.mxu0 0
      %678 = vmatpush1.bf16.msra.mxu0 0
      %679 = vmatprep.subr.bf16.mxu0 0
      %680 = vmatpush1.bf16.msra.mxu0 0
      %681 = vmatprep.subr.bf16.mxu0 0
      %682 = vmatpush1.bf16.msra.mxu0 0
      %683 = vmatprep.subr.bf16.mxu0 0
      %684 = vmatpush1.bf16.msra.mxu0 0
      %685 = vmatprep.subr.bf16.mxu0 %v669
      %686 = vmatpush1.bf16.msra.mxu0 %v666
      %687 = vmatprep.subr.bf16.mxu0 0
      %688 = vmatpush2.bf16.msra.mxu0 0
      %689 = vmatprep.subr.bf16.mxu0 0
      %690 = vmatpush2.bf16.msra.mxu0 0
      %691 = vmatprep.subr.bf16.mxu0 0
      %692 = vmatpush2.bf16.msra.mxu0 0
      %693 = vmatprep.subr.bf16.mxu0 0
      %694 = vmatpush2.bf16.msra.mxu0 0
      %695 = vmatprep.subr.bf16.mxu0 0
      %696 = vmatpush2.bf16.msra.mxu0 0
      %697 = vmatprep.subr.bf16.mxu0 0
      %698 = vmatpush2.bf16.msra.mxu0 0
      %699 = vmatprep.subr.bf16.mxu0 0
      %700 = vmatpush2.bf16.msra.mxu0 0
      %701 = vmatprep.subr.bf16.mxu0 0
      %702 = vmatpush2.bf16.msra.mxu0 0
      %703 = vmatprep.mubr.bf16.mxu0 0
      %704 = vmatmul.mubr.bf16.gmra.mxu0 %v663
      %v705 = vpop.f32.mrf.mxu0
      %v706 = vadd.f32 0.0, %v705
      %v707 = vpop.f32.mrf.mxu0
      %v708 = vadd.f32 0.0, %v707
      %v709 = vpop.f32.mrf.mxu0
      %v710 = vpop.f32.mrf.mxu0
      %711 = vdwg.mxu0
      %v712 = vadd.f32 %v643, %v706
      %v713 = vadd.f32 %v644, %v708
      %s714 = scalar_lea.vmem %s213, 28
      %v715 = vld [vmem:[%s714] sm:$0xf]
      %716 = vrot.lane.b32.xlu0 %v252, 95
      %v717 = vpop.permute.xlu0 %716
      %718 = vrot.lane.b32.xlu0 %v253, 95
      %v719 = vpop.permute.xlu0 %718
      %720 = vrot.lane.b32.xlu0 %v254, 95
      %v721 = vpop.permute.xlu0 %720
      %vm722 = vcmask 777216
      %v723 = vsel %vm722, %v717, %v719
      %v724 = vsel %vm722, %v719, %v721
      %v726 = vsel %vm267, %v715, 0
      %v729 = vsel %vm271, %v723, 0
      %v732 = vsel %vm271, %v724, 0
      %734 = vmatprep.subr.bf16.mxu0 0
      %735 = vmatpush1.bf16.msra.mxu0 0
      %736 = vmatprep.subr.bf16.mxu0 0
      %737 = vmatpush1.bf16.msra.mxu0 0
      %738 = vmatprep.subr.bf16.mxu0 0
      %739 = vmatpush1.bf16.msra.mxu0 0
      %740 = vmatprep.subr.bf16.mxu0 0
      %741 = vmatpush1.bf16.msra.mxu0 0
      %742 = vmatprep.subr.bf16.mxu0 0
      %743 = vmatpush1.bf16.msra.mxu0 0
      %744 = vmatprep.subr.bf16.mxu0 0
      %745 = vmatpush1.bf16.msra.mxu0 0
      %746 = vmatprep.subr.bf16.mxu0 0
      %747 = vmatpush1.bf16.msra.mxu0 0
      %748 = vmatprep.subr.bf16.mxu0 %v732
      %749 = vmatpush1.bf16.msra.mxu0 %v729
      %750 = vmatprep.subr.bf16.mxu0 0
      %751 = vmatpush2.bf16.msra.mxu0 0
      %752 = vmatprep.subr.bf16.mxu0 0
      %753 = vmatpush2.bf16.msra.mxu0 0
      %754 = vmatprep.subr.bf16.mxu0 0
      %755 = vmatpush2.bf16.msra.mxu0 0
      %756 = vmatprep.subr.bf16.mxu0 0
      %757 = vmatpush2.bf16.msra.mxu0 0
      %758 = vmatprep.subr.bf16.mxu0 0
      %759 = vmatpush2.bf16.msra.mxu0 0
      %760 = vmatprep.subr.bf16.mxu0 0
      %761 = vmatpush2.bf16.msra.mxu0 0
      %762 = vmatprep.subr.bf16.mxu0 0
      %763 = vmatpush2.bf16.msra.mxu0 0
      %764 = vmatprep.subr.bf16.mxu0 0
      %765 = vmatpush2.bf16.msra.mxu0 0
      %766 = vmatprep.mubr.bf16.mxu0 0
      %767 = vmatmul.mubr.bf16.gmra.mxu0 %v726
      %v768 = vpop.f32.mrf.mxu0
      %v769 = vadd.f32 0.0, %v768
      %v770 = vpop.f32.mrf.mxu0
      %v771 = vadd.f32 0.0, %v770
      %v772 = vpop.f32.mrf.mxu0
      %v773 = vpop.f32.mrf.mxu0
      %774 = vdwg.mxu0
      %v775 = vadd.f32 %v712, %v769
      %v776 = vadd.f32 %v713, %v771
      %777 = vrot.lane.b32.xlu0 %v228, 94
      %v778 = vpop.permute.xlu0 %777
      %779 = vrot.lane.b32.xlu0 %v242, 94
      %v780 = vpop.permute.xlu0 %779
      %781 = vrot.lane.b32.xlu0 %v229, 94
      %v782 = vpop.permute.xlu0 %781
      %vm783 = vcmask 769024
      %v784 = vsel %vm783, %v778, %v780
      %v785 = vsel %vm783, %v780, %v782
      %v788 = vsel %vm373, %v784, 0.0
      %v789 = vsel %vm374, %v785, 0.0
      %s790 = scalar_lea.vmem %s213, 32
      %v791 = vld [vmem:[%s790] sm:$0xf]
      %v792 = vpack.c.bf16 %v788, %v788
      %v793 = vpack.c.bf16 %v789, %v789
      %v795 = vsel %vm267, %v791, 0
      %v798 = vsel %vm271, %v792, 0
      %v801 = vsel %vm271, %v793, 0
      %803 = vmatprep.subr.bf16.mxu0 0
      %804 = vmatpush1.bf16.msra.mxu0 0
      %805 = vmatprep.subr.bf16.mxu0 0
      %806 = vmatpush1.bf16.msra.mxu0 0
      %807 = vmatprep.subr.bf16.mxu0 0
      %808 = vmatpush1.bf16.msra.mxu0 0
      %809 = vmatprep.subr.bf16.mxu0 0
      %810 = vmatpush1.bf16.msra.mxu0 0
      %811 = vmatprep.subr.bf16.mxu0 0
      %812 = vmatpush1.bf16.msra.mxu0 0
      %813 = vmatprep.subr.bf16.mxu0 0
      %814 = vmatpush1.bf16.msra.mxu0 0
      %815 = vmatprep.subr.bf16.mxu0 0
      %816 = vmatpush1.bf16.msra.mxu0 0
      %817 = vmatprep.subr.bf16.mxu0 %v801
      %818 = vmatpush1.bf16.msra.mxu0 %v798
      %819 = vmatprep.subr.bf16.mxu0 0
      %820 = vmatpush2.bf16.msra.mxu0 0
      %821 = vmatprep.subr.bf16.mxu0 0
      %822 = vmatpush2.bf16.msra.mxu0 0
      %823 = vmatprep.subr.bf16.mxu0 0
      %824 = vmatpush2.bf16.msra.mxu0 0
      %825 = vmatprep.subr.bf16.mxu0 0
      %826 = vmatpush2.bf16.msra.mxu0 0
      %827 = vmatprep.subr.bf16.mxu0 0
      %828 = vmatpush2.bf16.msra.mxu0 0
      %829 = vmatprep.subr.bf16.mxu0 0
      %830 = vmatpush2.bf16.msra.mxu0 0
      %831 = vmatprep.subr.bf16.mxu0 0
      %832 = vmatpush2.bf16.msra.mxu0 0
      %833 = vmatprep.subr.bf16.mxu0 0
      %834 = vmatpush2.bf16.msra.mxu0 0
      %835 = vmatprep.mubr.bf16.mxu0 0
      %836 = vmatmul.mubr.bf16.gmra.mxu0 %v795
      %v837 = vpop.f32.mrf.mxu0
      %v838 = vadd.f32 0.0, %v837
      %v839 = vpop.f32.mrf.mxu0
      %v840 = vadd.f32 0.0, %v839
      %v841 = vpop.f32.mrf.mxu0
      %v842 = vpop.f32.mrf.mxu0
      %843 = vdwg.mxu0
      %v844 = vadd.f32 %v775, %v838
      %v845 = vadd.f32 %v776, %v840
      %v846 = vld [vmem:[%s217] sm:$0xff]
      %848 = vset.pattern.permute.xlu0 0
      %849 = vperm.xlu0 %848, %v846
      %v850 = vpop.permute.xlu0 %849
      %v852 = vadd.f32 %v844, %v850
      %v853 = vadd.f32 %v845, %v850
      %v854 = vmax.f32 %v852, 0.0
      %v855 = vmax.f32 %v853, 0.0
      %856 = vst [vmem:[%s226] sm:$0xff] %v854
      %857 = vst [vmem:[%s226 + $0x8] sm:$0xff] %v855
      %p858 = scmp.lt.s32.totalorder %s18, 1
      %s859 = scalar_select %p858, %s18, 1
      %p860 = scmp.lt.s32.totalorder %s19, 0
      %s861 = scalar_select %p860, %s19, 0
      %s862 = smul.addr %s861, 2
      %s863 = smul.addr %s859, 2
      %s864 = sadd.s32 %s862, %s863
      %s865 = smul.addr %s864, 8
      %s866 = scalar_lea.vmem %s3, %s865
      // Predicated region
      $region33: #{netwrapper_forward.2} parent=31 // pred_check
        %p867 = pneg %p124
      $region34: #{netwrapper_forward.2} parent=31 // pred_check_branch
        %869 = sbr.rel (%p867) target = $region36
      $region35: #{netwrapper_forward.2} parent=31 // pred_region
        _
      $region36: #{netwrapper_forward.2} parent=31 // pred_fallthru
        _
    $region32: #{netwrapper_forward.2} parent=5 // pred_fallthru
      _
    %p870 = scmp.le.s32.totalorder 2, %s9
    // Predicated region
    $region37: #{netwrapper_forward.2} parent=5 // pred_check
      %p871 = pneg %p870
    $region38: #{netwrapper_forward.2} parent=5 // pred_check_branch
      %873 = sbr.rel (%p871) target = $region40
    $region39: #{netwrapper_forward.2} parent=5 // pred_region
      %s874 = ssub.s32 %s9, 2
      // Predicated region
      $region41: #{netwrapper_forward.2} parent=39 // pred_check
        %p875 = pneg %p130
      $region42: #{netwrapper_forward.2} parent=39 // pred_check_branch
        %877 = sbr.rel (%p875) target = $region44
      $region43: #{netwrapper_forward.2} parent=39 // pred_region
        %p878 = scmp.lt.s32.totalorder %s20, 1
        %s879 = scalar_select %p878, %s20, 1
        %p880 = scmp.lt.s32.totalorder %s21, 0
        %s881 = scalar_select %p880, %s21, 0
        %s882 = smul.addr %s881, 2
        %s883 = smul.addr %s879, 2
        %s884 = sadd.s32 %s882, %s883
        %s885 = smul.addr %s884, 8
        %s886 = scalar_lea.vmem %s3, %s885
      $region44: #{netwrapper_forward.2} parent=39 // pred_fallthru
        _
    $region40: #{netwrapper_forward.2} parent=5 // pred_fallthru
      _
  $region6: #{netwrapper_forward.2} parent=0 // loop_footer
    %s13 = sadd.s32 1, %s9
  $region7: #{netwrapper_forward.2} parent=0 // loop_footer_branch
    %8 = sbr.rel target = $region3
  $region8: #{netwrapper_forward.2} parent=0 // loop_exit
    _

// kernel: netwrapper_forward.3
$region0: #{netwrapper_forward.3}
  #allocation0 [shape = 'u32[]', space=smem, size = 0x4, offset = 0x4, fixed_abs, tag = 'smem constant byte address 0x4 - core index']
  #allocation1 [shape = 'u32[144,128]{1,0:T(1,128)}', space=vmem, size = 0x12000, scoped, tag = 'internal scratch']
  #allocation2 [shape = 'f32[2,128]{1,0:T(2,128)}', space=vmem, size = 0x400, scoped, tag = 'scratch operand']
  %s0 = inlined_call_operand.vmem [shape: f32[2,2048], index: 0, kind: input, shape index: {}]
  %s1 = inlined_call_operand.vmem [shape: bf16[2048,128], index: 1, kind: input, shape index: {}]
  %s2 = inlined_call_operand.vmem [shape: f32[1,128], index: 2, kind: input, shape index: {}]
  %s3 = inlined_call_operand.vmem [shape: f32[1,128], index: 3, kind: input, shape index: {}]
  %s4 = inlined_call_operand.vmem [shape: f32[1,128], index: 4, kind: input, shape index: {}]
  %s5 = inlined_call_operand.vmem [shape: f32[128,128], index: 5, kind: input, shape index: {}]
  %s6 = inlined_call_operand.vmem [shape: f32[1,128], index: 6, kind: input, shape index: {}]
  %s7 = inlined_call_operand.hbm [shape: f32[2,128], index: 7, kind: output, shape index: {}]
  %s8 = sld [smem:[#allocation0]]
  $region69: #{netwrapper_forward.3} parent=0
    _
  %s10 = ssub.s32 1, %s8
  %s11 = scalar_select 0, %s10, %s8
  $region1: #{netwrapper_forward.3} parent=0
    #allocation3 [shape = 'u8[1024]{0}', space=vmem, size = 0x400, scoped, tag = 'output window, operand 0, single buffered']
    #allocation4 [shape = 's32[2]{0}', space=sflag, size = 0x8, scoped, tag = 'scoped memory for netwrapper_forward.3']
    %12 = vsyncpa [#allocation4], 0
    loop: start=0, step=1, limit=6
    $region2: #{netwrapper_forward.3} parent=1 // loop_pre_header
      _
    $region3: #{netwrapper_forward.3} parent=1 // loop_header
      %s14 = sphi 0, %s18
      %p15 = scmp.ge.s32.totalorder %s14, 6
      %s24 = sphi 0, %s26
      %s27 = sphi 0, %s24
      %s28 = sphi 0, %s27
      %s44 = sphi 0, %s28
      %s50 = sphi 0, %s52
      %s53 = sphi 0, %s50
      %s54 = sphi 0, %s53
      %s70 = sphi 0, %s54
      %s74 = sphi 0, %s74
      %s76 = sphi 0, %s74
      %s77 = sphi 0, %s76
      %s91 = sphi 0, %s77
      %s95 = sphi 0, %s95
      %s97 = sphi 0, %s95
      %s98 = sphi 0, %s97
      %s112 = sphi 0, %s98
      %s116 = sphi 0, %s116
      %s118 = sphi 0, %s116
      %s119 = sphi 0, %s118
      %s133 = sphi 0, %s119
      %s137 = sphi 0, %s137
      %s139 = sphi 0, %s137
      %s140 = sphi 0, %s139
      %s154 = sphi 0, %s140
      %s158 = sphi 0, %s158
      %s160 = sphi 0, %s158
      %s161 = sphi 0, %s160
      %s175 = sphi 0, %s161
      %s179 = sphi 0, %s179
      %s181 = sphi 0, %s179
      %s182 = sphi 0, %s181
      %s196 = sphi 0, %s182
    $region4: #{netwrapper_forward.3} parent=1 // loop_header_branch
      %17 = sbr.rel (%p15) target = $region8
    $region5: #{netwrapper_forward.3} parent=1 // loop_body
      %s19 = ssub.s32 %s14, 1
      %s20 = ssub.s32 %s14, 2
      %s21 = sadd.s32 %s14, 1
      %s22 = ssub.s32 %s14, %s21
      %p23 = scmp.eq.s32.totalorder %s22, 0
      %s25 = sadd.s32 %s24, 1
      %s26 = scalar_select %p23, %s24, %s25
      %p29 = pneg %p23
      %p30 = scmp.eq.s32.totalorder %s14, 3
      %p31 = por %p29, %p30
      %p32 = scmp.ne.s32.totalorder %s24, %s27
      %p33 = scmp.eq.s32.totalorder %s14, 0
      %p34 = por %p32, %p33
      %p35 = scmp.ne.s32.totalorder %s24, %s27
      %p36 = scmp.eq.s32.totalorder %s19, 3
      %p37 = por %p35, %p36
      %p38 = scmp.ne.s32.totalorder %s27, %s28
      %p39 = scmp.eq.s32.totalorder %s19, 0
      %p40 = por %p38, %p39
      %p41 = scmp.ne.s32.totalorder %s27, %s28
      %p42 = scmp.eq.s32.totalorder %s20, 3
      %p43 = por %p41, %p42
      %p45 = scmp.ne.s32.totalorder %s28, %s44
      %p46 = scmp.eq.s32.totalorder %s20, 0
      %p47 = por %p45, %p46
      %s48 = ssub.s32 %s14, %s21
      %p49 = scmp.eq.s32.totalorder %s48, 0
      %s51 = sadd.s32 %s50, 1
      %s52 = scalar_select %p49, %s50, %s51
      %p55 = pneg %p49
      %p56 = scmp.eq.s32.totalorder %s14, 3
      %p57 = por %p55, %p56
      %p58 = scmp.ne.s32.totalorder %s50, %s53
      %p59 = scmp.eq.s32.totalorder %s14, 0
      %p60 = por %p58, %p59
      %p61 = scmp.ne.s32.totalorder %s50, %s53
      %p62 = scmp.eq.s32.totalorder %s19, 3
      %p63 = por %p61, %p62
      %p64 = scmp.ne.s32.totalorder %s53, %s54
      %p65 = scmp.eq.s32.totalorder %s19, 0
      %p66 = por %p64, %p65
      %p67 = scmp.ne.s32.totalorder %s53, %s54
      %p68 = scmp.eq.s32.totalorder %s20, 3
      %p69 = por %p67, %p68
      %p71 = scmp.ne.s32.totalorder %s54, %s70
      %p72 = scmp.eq.s32.totalorder %s20, 0
      %p73 = por %p71, %p72
      %s75 = sadd.s32 %s74, 1
      %p78 = scmp.eq.s32.totalorder %s14, 3
      %p79 = scmp.ne.s32.totalorder %s74, %s76
      %p80 = scmp.eq.s32.totalorder %s14, 0
      %p81 = por %p79, %p80
      %p82 = scmp.ne.s32.totalorder %s74, %s76
      %p83 = scmp.eq.s32.totalorder %s19, 3
      %p84 = por %p82, %p83
      %p85 = scmp.ne.s32.totalorder %s76, %s77
      %p86 = scmp.eq.s32.totalorder %s19, 0
      %p87 = por %p85, %p86
      %p88 = scmp.ne.s32.totalorder %s76, %s77
      %p89 = scmp.eq.s32.totalorder %s20, 3
      %p90 = por %p88, %p89
      %p92 = scmp.ne.s32.totalorder %s77, %s91
      %p93 = scmp.eq.s32.totalorder %s20, 0
      %p94 = por %p92, %p93
      %s96 = sadd.s32 %s95, 1
      %p99 = scmp.eq.s32.totalorder %s14, 3
      %p100 = scmp.ne.s32.totalorder %s95, %s97
      %p101 = scmp.eq.s32.totalorder %s14, 0
      %p102 = por %p100, %p101
      %p103 = scmp.ne.s32.totalorder %s95, %s97
      %p104 = scmp.eq.s32.totalorder %s19, 3
      %p105 = por %p103, %p104
      %p106 = scmp.ne.s32.totalorder %s97, %s98
      %p107 = scmp.eq.s32.totalorder %s19, 0
      %p108 = por %p106, %p107
      %p109 = scmp.ne.s32.totalorder %s97, %s98
      %p110 = scmp.eq.s32.totalorder %s20, 3
      %p111 = por %p109, %p110
      %p113 = scmp.ne.s32.totalorder %s98, %s112
      %p114 = scmp.eq.s32.totalorder %s20, 0
      %p115 = por %p113, %p114
      %s117 = sadd.s32 %s116, 1
      %p120 = scmp.eq.s32.totalorder %s14, 3
      %p121 = scmp.ne.s32.totalorder %s116, %s118
      %p122 = scmp.eq.s32.totalorder %s14, 0
      %p123 = por %p121, %p122
      %p124 = scmp.ne.s32.totalorder %s116, %s118
      %p125 = scmp.eq.s32.totalorder %s19, 3
      %p126 = por %p124, %p125
      %p127 = scmp.ne.s32.totalorder %s118, %s119
      %p128 = scmp.eq.s32.totalorder %s19, 0
      %p129 = por %p127, %p128
      %p130 = scmp.ne.s32.totalorder %s118, %s119
      %p131 = scmp.eq.s32.totalorder %s20, 3
      %p132 = por %p130, %p131
      %p134 = scmp.ne.s32.totalorder %s119, %s133
      %p135 = scmp.eq.s32.totalorder %s20, 0
      %p136 = por %p134, %p135
      %s138 = sadd.s32 %s137, 1
      %p141 = scmp.eq.s32.totalorder %s14, 3
      %p142 = scmp.ne.s32.totalorder %s137, %s139
      %p143 = scmp.eq.s32.totalorder %s14, 0
      %p144 = por %p142, %p143
      %p145 = scmp.ne.s32.totalorder %s137, %s139
      %p146 = scmp.eq.s32.totalorder %s19, 3
      %p147 = por %p145, %p146
      %p148 = scmp.ne.s32.totalorder %s139, %s140
      %p149 = scmp.eq.s32.totalorder %s19, 0
      %p150 = por %p148, %p149
      %p151 = scmp.ne.s32.totalorder %s139, %s140
      %p152 = scmp.eq.s32.totalorder %s20, 3
      %p153 = por %p151, %p152
      %p155 = scmp.ne.s32.totalorder %s140, %s154
      %p156 = scmp.eq.s32.totalorder %s20, 0
      %p157 = por %p155, %p156
      %s159 = sadd.s32 %s158, 1
      %p162 = scmp.eq.s32.totalorder %s14, 3
      %p163 = scmp.ne.s32.totalorder %s158, %s160
      %p164 = scmp.eq.s32.totalorder %s14, 0
      %p165 = por %p163, %p164
      %p166 = scmp.ne.s32.totalorder %s158, %s160
      %p167 = scmp.eq.s32.totalorder %s19, 3
      %p168 = por %p166, %p167
      %p169 = scmp.ne.s32.totalorder %s160, %s161
      %p170 = scmp.eq.s32.totalorder %s19, 0
      %p171 = por %p169, %p170
      %p172 = scmp.ne.s32.totalorder %s160, %s161
      %p173 = scmp.eq.s32.totalorder %s20, 3
      %p174 = por %p172, %p173
      %p176 = scmp.ne.s32.totalorder %s161, %s175
      %p177 = scmp.eq.s32.totalorder %s20, 0
      %p178 = por %p176, %p177
      %s180 = sadd.s32 %s179, 1
      %p183 = scmp.eq.s32.totalorder %s14, 3
      %p184 = scmp.ne.s32.totalorder %s179, %s181
      %p185 = scmp.eq.s32.totalorder %s14, 0
      %p186 = por %p184, %p185
      %p187 = scmp.ne.s32.totalorder %s179, %s181
      %p188 = scmp.eq.s32.totalorder %s19, 3
      %p189 = por %p187, %p188
      %p190 = scmp.ne.s32.totalorder %s181, %s182
      %p191 = scmp.eq.s32.totalorder %s19, 0
      %p192 = por %p190, %p191
      %p193 = scmp.ne.s32.totalorder %s181, %s182
      %p194 = scmp.eq.s32.totalorder %s20, 3
      %p195 = por %p193, %p194
      %p197 = scmp.ne.s32.totalorder %s182, %s196
      %p198 = scmp.eq.s32.totalorder %s20, 0
      %p199 = por %p197, %p198
      %p200 = scmp.le.s32.totalorder 1, %s14
      %p201 = scmp.lt.s32.totalorder %s14, 5
      %p202 = pnand %p200, %p201
      %p203 = pneg %p202
      // Predicated region
      $region9: #{netwrapper_forward.3} parent=5 // pred_check
        _
      $region10: #{netwrapper_forward.3} parent=5 // pred_check_branch
        %205 = sbr.rel (%p202) target = $region12
      $region11: #{netwrapper_forward.3} parent=5 // pred_region
        %s206 = ssub.s32 %s14, 1
        // Predicated region
        $region13: #{netwrapper_forward.3} parent=11 // pred_check
          %p207 = pneg %p87
        $region14: #{netwrapper_forward.3} parent=11 // pred_check_branch
          %209 = sbr.rel (%p207) target = $region16
        $region15: #{netwrapper_forward.3} parent=11 // pred_region
          _
        $region16: #{netwrapper_forward.3} parent=11 // pred_fallthru
          _
        // Predicated region
        $region17: #{netwrapper_forward.3} parent=11 // pred_check
          %p210 = pneg %p108
        $region18: #{netwrapper_forward.3} parent=11 // pred_check_branch
          %212 = sbr.rel (%p210) target = $region20
        $region19: #{netwrapper_forward.3} parent=11 // pred_region
          _
        $region20: #{netwrapper_forward.3} parent=11 // pred_fallthru
          _
        // Predicated region
        $region21: #{netwrapper_forward.3} parent=11 // pred_check
          %p213 = pneg %p129
        $region22: #{netwrapper_forward.3} parent=11 // pred_check_branch
          %215 = sbr.rel (%p213) target = $region24
        $region23: #{netwrapper_forward.3} parent=11 // pred_region
          _
        $region24: #{netwrapper_forward.3} parent=11 // pred_fallthru
          _
        // Predicated region
        $region25: #{netwrapper_forward.3} parent=11 // pred_check
          %p216 = pneg %p150
        $region26: #{netwrapper_forward.3} parent=11 // pred_check_branch
          %218 = sbr.rel (%p216) target = $region28
        $region27: #{netwrapper_forward.3} parent=11 // pred_region
          _
        $region28: #{netwrapper_forward.3} parent=11 // pred_fallthru
          _
        // Predicated region
        $region29: #{netwrapper_forward.3} parent=11 // pred_check
          %p219 = pneg %p171
        $region30: #{netwrapper_forward.3} parent=11 // pred_check_branch
          %221 = sbr.rel (%p219) target = $region32
        $region31: #{netwrapper_forward.3} parent=11 // pred_region
          _
        $region32: #{netwrapper_forward.3} parent=11 // pred_fallthru
          _
      $region12: #{netwrapper_forward.3} parent=5 // pred_fallthru
        _
      %p222 = scmp.lt.s32.totalorder %s14, 4
      // Predicated region
      $region33: #{netwrapper_forward.3} parent=5 // pred_check
        %p223 = pneg %p222
      $region34: #{netwrapper_forward.3} parent=5 // pred_check_branch
        %225 = sbr.rel (%p223) target = $region36
      $region35: #{netwrapper_forward.3} parent=5 // pred_region
        // Predicated region
        $region37: #{netwrapper_forward.3} parent=35 // pred_check
          %p226 = pneg %p34
        $region38: #{netwrapper_forward.3} parent=35 // pred_check_branch
          %228 = sbr.rel (%p226) target = $region40
        $region39: #{netwrapper_forward.3} parent=35 // pred_region
          %s229 = smul.u32 4, %s14
          %p230 = scmp.lt.s32.totalorder %s229, 15
          %s231 = scalar_select %p230, %s229, 15
          %s232 = smul.addr %s231, 2
          %s233 = scalar_lea.vmem %s0, %s232
          %s234 = smul.u32 4, %s14
        $region40: #{netwrapper_forward.3} parent=35 // pred_fallthru
          _
        // Predicated region
        $region41: #{netwrapper_forward.3} parent=35 // pred_check
          %p235 = pneg %p60
        $region42: #{netwrapper_forward.3} parent=35 // pred_check_branch
          %237 = sbr.rel (%p235) target = $region44
        $region43: #{netwrapper_forward.3} parent=35 // pred_region
          %s238 = smul.u32 64, %s14
          %p239 = scmp.lt.s32.totalorder %s238, 255
          %s240 = scalar_select %p239, %s238, 255
          %s241 = smul.addr %s240, 4
          %s242 = scalar_lea.vmem %s1, %s241
          %s243 = smul.u32 64, %s14
        $region44: #{netwrapper_forward.3} parent=35 // pred_fallthru
          _
      $region36: #{netwrapper_forward.3} parent=5 // pred_fallthru
        _
      %p244 = scmp.le.s32.totalorder 1, %s14
      %p245 = scmp.lt.s32.totalorder %s14, 5
      %p246 = pnand %p244, %p245
      %p247 = pneg %p246
      // Predicated region
      $region45: #{netwrapper_forward.3} parent=5 // pred_check
        _
      $region46: #{netwrapper_forward.3} parent=5 // pred_check_branch
        %249 = sbr.rel (%p246) target = $region48
      $region47: #{netwrapper_forward.3} parent=5 // pred_region
        %s250 = ssub.s32 %s14, 1
        %s251 = smul.u32 4, %s19
        %p252 = scmp.lt.s32.totalorder %s251, 15
        %s253 = scalar_select %p252, %s251, 15
        %s254 = smul.addr %s253, 2
        %s255 = scalar_lea.vmem %s0, %s254
        %p256 = pneg %p40
        %p257 = pneg %p37
        %s258 = smul.u32 64, %s19
        %p259 = scmp.lt.s32.totalorder %s258, 255
        %s260 = scalar_select %p259, %s258, 255
        %s261 = smul.addr %s260, 4
        %s262 = scalar_lea.vmem %s1, %s261
        %p263 = pneg %p66
        %p264 = pneg %p63
        %p265 = pneg %p87
        %p266 = pneg %p84
        %p267 = pneg %p108
        %p268 = pneg %p105
        %p269 = pneg %p129
        %p270 = pneg %p126
        %p271 = pneg %p150
        %p272 = pneg %p147
        %p273 = pneg %p171
        %p274 = pneg %p168
        %p275 = pneg %p192
        %p276 = pneg %p189
        %s277 = smul.u32 4, %s19
        %p278 = scmp.lt.s32.totalorder %s277, 15
        %s279 = scalar_select %p278, %s277, 15
        %s280 = smul.addr %s279, 2
        %s281 = scalar_lea.vmem %s0, %s280
        %s282 = smul.u32 4, %s19
        %s283 = smul.u32 64, %s19
        %p284 = scmp.lt.s32.totalorder %s283, 255
        %s285 = scalar_select %p284, %s283, 255
        %s286 = smul.addr %s285, 4
        %s287 = scalar_lea.vmem %s1, %s286
        %s288 = smul.u32 64, %s19
        %p290 = scmp.eq.s32.totalorder %s19, 0
        // Predicated region
        $region49: #{netwrapper_forward.3} parent=47 // pred_check
          %p291 = pneg %p290
        $region50: #{netwrapper_forward.3} parent=47 // pred_check_branch
          %293 = sbr.rel (%p291) target = $region52
        $region51: #{netwrapper_forward.3} parent=47 // pred_region
          %294 = vst [vmem:[#allocation2] sm:$0x3] 0.0
        $region52: #{netwrapper_forward.3} parent=47 // pred_fallthru
          _
        %v295 = vld [vmem:[#allocation2] sm:$0x3]
        %v296 = vld [vmem:[%s281] sm:$0xff]
        %v298 = vcombine.high %v296, %v296
        %v300 = vunpack.c.l.s4 1983009808
        %v301 = vunpack.c.0.s8 %v300
        %v302 = vlaneseq
        %v303 = vshrl.u32 %v302, 7
        %v304 = vsub.s32 %v301, %v303
        %v305 = vrot.slane %v296, %v304
        %v307 = vunpack.c.l.s4 1983009808
        %v308 = vunpack.c.0.s8 %v307
        %v309 = vlaneseq
        %v310 = vshrl.u32 %v309, 7
        %v311 = vsub.s32 %v308, %v310
        %v312 = vrot.slane %v298, %v311
        %v313 = vcombine.high %v305, %v305
        %v314 = vcombine.high %v312, %v312
        %v319 = vpack.c.bf16 %v305, %v305
        %v320 = vpack.c.bf16 %v313, %v313
        %v321 = vpack.c.bf16 %v312, %v312
        %v322 = vpack.c.bf16 %v314, %v314
        %v323 = vld [vmem:[%s287] sm:$0xf]
        %v324 = vld [vmem:[%s287 + $0x4] sm:$0xf]
        %v325 = vld [vmem:[%s287 + $0x8] sm:$0xf]
        %v326 = vld [vmem:[%s287 + $0xc] sm:$0xf]
        %v327 = vld [vmem:[%s287 + $0x10] sm:$0xf]
        %v328 = vld [vmem:[%s287 + $0x14] sm:$0xf]
        %v329 = vld [vmem:[%s287 + $0x18] sm:$0xf]
        %v330 = vld [vmem:[%s287 + $0x1c] sm:$0xf]
        %v331 = vld [vmem:[%s287 + $0x20] sm:$0xf]
        %v332 = vld [vmem:[%s287 + $0x24] sm:$0xf]
        %v333 = vld [vmem:[%s287 + $0x28] sm:$0xf]
        %v334 = vld [vmem:[%s287 + $0x2c] sm:$0xf]
        %v335 = vld [vmem:[%s287 + $0x30] sm:$0xf]
        %v336 = vld [vmem:[%s287 + $0x34] sm:$0xf]
        %v337 = vld [vmem:[%s287 + $0x38] sm:$0xf]
        %v338 = vld [vmem:[%s287 + $0x3c] sm:$0xf]
        %v339 = vld [vmem:[%s287 + $0x40] sm:$0xf]
        %v340 = vld [vmem:[%s287 + $0x44] sm:$0xf]
        %v341 = vld [vmem:[%s287 + $0x48] sm:$0xf]
        %v342 = vld [vmem:[%s287 + $0x4c] sm:$0xf]
        %v343 = vld [vmem:[%s287 + $0x50] sm:$0xf]
        %v344 = vld [vmem:[%s287 + $0x54] sm:$0xf]
        %v345 = vld [vmem:[%s287 + $0x58] sm:$0xf]
        %v346 = vld [vmem:[%s287 + $0x5c] sm:$0xf]
        %v347 = vld [vmem:[%s287 + $0x60] sm:$0xf]
        %v348 = vld [vmem:[%s287 + $0x64] sm:$0xf]
        %v349 = vld [vmem:[%s287 + $0x68] sm:$0xf]
        %v350 = vld [vmem:[%s287 + $0x6c] sm:$0xf]
        %v351 = vld [vmem:[%s287 + $0x70] sm:$0xf]
        %v352 = vld [vmem:[%s287 + $0x74] sm:$0xf]
        %v353 = vld [vmem:[%s287 + $0x78] sm:$0xf]
        %v354 = vld [vmem:[%s287 + $0x7c] sm:$0xf]
        %v355 = vld [vmem:[%s287 + $0x80] sm:$0xf]
        %v356 = vld [vmem:[%s287 + $0x84] sm:$0xf]
        %v357 = vld [vmem:[%s287 + $0x88] sm:$0xf]
        %v358 = vld [vmem:[%s287 + $0x8c] sm:$0xf]
        %v359 = vld [vmem:[%s287 + $0x90] sm:$0xf]
        %v360 = vld [vmem:[%s287 + $0x94] sm:$0xf]
        %v361 = vld [vmem:[%s287 + $0x98] sm:$0xf]
        %v362 = vld [vmem:[%s287 + $0x9c] sm:$0xf]
        %v363 = vld [vmem:[%s287 + $0xa0] sm:$0xf]
        %v364 = vld [vmem:[%s287 + $0xa4] sm:$0xf]
        %v365 = vld [vmem:[%s287 + $0xa8] sm:$0xf]
        %v366 = vld [vmem:[%s287 + $0xac] sm:$0xf]
        %v367 = vld [vmem:[%s287 + $0xb0] sm:$0xf]
        %v368 = vld [vmem:[%s287 + $0xb4] sm:$0xf]
        %v369 = vld [vmem:[%s287 + $0xb8] sm:$0xf]
        %v370 = vld [vmem:[%s287 + $0xbc] sm:$0xf]
        %v371 = vld [vmem:[%s287 + $0xc0] sm:$0xf]
        %v372 = vld [vmem:[%s287 + $0xc4] sm:$0xf]
        %v373 = vld [vmem:[%s287 + $0xc8] sm:$0xf]
        %v374 = vld [vmem:[%s287 + $0xcc] sm:$0xf]
        %v375 = vld [vmem:[%s287 + $0xd0] sm:$0xf]
        %v376 = vld [vmem:[%s287 + $0xd4] sm:$0xf]
        %v377 = vld [vmem:[%s287 + $0xd8] sm:$0xf]
        %v378 = vld [vmem:[%s287 + $0xdc] sm:$0xf]
        %v379 = vld [vmem:[%s287 + $0xe0] sm:$0xf]
        %v380 = vld [vmem:[%s287 + $0xe4] sm:$0xf]
        %v381 = vld [vmem:[%s287 + $0xe8] sm:$0xf]
        %v382 = vld [vmem:[%s287 + $0xec] sm:$0xf]
        %v383 = vld [vmem:[%s287 + $0xf0] sm:$0xf]
        %v384 = vld [vmem:[%s287 + $0xf4] sm:$0xf]
        %v385 = vld [vmem:[%s287 + $0xf8] sm:$0xf]
        %v386 = vld [vmem:[%s287 + $0xfc] sm:$0xf]
        %v451 = vunpack.c.l.b16 %v323
        %v452 = vunpack.c.l.b16 %v324
        %v453 = vunpack.c.l.b16 %v325
        %v454 = vunpack.c.l.b16 %v326
        %v455 = vunpack.c.l.b16 %v327
        %v456 = vunpack.c.l.b16 %v328
        %v457 = vunpack.c.l.b16 %v329
        %v458 = vunpack.c.l.b16 %v330
        %v459 = vunpack.c.l.b16 %v331
        %v460 = vunpack.c.l.b16 %v332
        %v461 = vunpack.c.l.b16 %v333
        %v462 = vunpack.c.l.b16 %v334
        %v463 = vunpack.c.l.b16 %v335
        %v464 = vunpack.c.l.b16 %v336
        %v465 = vunpack.c.l.b16 %v337
        %v466 = vunpack.c.l.b16 %v338
        %v467 = vunpack.c.l.b16 %v339
        %v468 = vunpack.c.l.b16 %v340
        %v469 = vunpack.c.l.b16 %v341
        %v470 = vunpack.c.l.b16 %v342
        %v471 = vunpack.c.l.b16 %v343
        %v472 = vunpack.c.l.b16 %v344
        %v473 = vunpack.c.l.b16 %v345
        %v474 = vunpack.c.l.b16 %v346
        %v475 = vunpack.c.l.b16 %v347
        %v476 = vunpack.c.l.b16 %v348
        %v477 = vunpack.c.l.b16 %v349
        %v478 = vunpack.c.l.b16 %v350
        %v479 = vunpack.c.l.b16 %v351
        %v480 = vunpack.c.l.b16 %v352
        %v481 = vunpack.c.l.b16 %v353
        %v482 = vunpack.c.l.b16 %v354
        %v483 = vunpack.c.l.b16 %v355
        %v484 = vunpack.c.l.b16 %v356
        %v485 = vunpack.c.l.b16 %v357
        %v486 = vunpack.c.l.b16 %v358
        %v487 = vunpack.c.l.b16 %v359
        %v488 = vunpack.c.l.b16 %v360
        %v489 = vunpack.c.l.b16 %v361
        %v490 = vunpack.c.l.b16 %v362
        %v491 = vunpack.c.l.b16 %v363
        %v492 = vunpack.c.l.b16 %v364
        %v493 = vunpack.c.l.b16 %v365
        %v494 = vunpack.c.l.b16 %v366
        %v495 = vunpack.c.l.b16 %v367
        %v496 = vunpack.c.l.b16 %v368
        %v497 = vunpack.c.l.b16 %v369
        %v498 = vunpack.c.l.b16 %v370
        %v499 = vunpack.c.l.b16 %v371
        %v500 = vunpack.c.l.b16 %v372
        %v501 = vunpack.c.l.b16 %v373
        %v502 = vunpack.c.l.b16 %v374
        %v503 = vunpack.c.l.b16 %v375
        %v504 = vunpack.c.l.b16 %v376
        %v505 = vunpack.c.l.b16 %v377
        %v506 = vunpack.c.l.b16 %v378
        %v507 = vunpack.c.l.b16 %v379
        %v508 = vunpack.c.l.b16 %v380
        %v509 = vunpack.c.l.b16 %v381
        %v510 = vunpack.c.l.b16 %v382
        %v511 = vunpack.c.l.b16 %v383
        %v512 = vunpack.c.l.b16 %v384
        %v513 = vunpack.c.l.b16 %v385
        %v514 = vunpack.c.l.b16 %v386
        %v515 = vpack.c.b16 %v452, %v451
        %v516 = vpack.c.b16 %v454, %v453
        %v517 = vpack.c.b16 %v456, %v455
        %v518 = vpack.c.b16 %v458, %v457
        %v519 = vpack.c.b16 %v460, %v459
        %v520 = vpack.c.b16 %v462, %v461
        %v521 = vpack.c.b16 %v464, %v463
        %v522 = vpack.c.b16 %v466, %v465
        %v523 = vpack.c.b16 %v468, %v467
        %v524 = vpack.c.b16 %v470, %v469
        %v525 = vpack.c.b16 %v472, %v471
        %v526 = vpack.c.b16 %v474, %v473
        %v527 = vpack.c.b16 %v476, %v475
        %v528 = vpack.c.b16 %v478, %v477
        %v529 = vpack.c.b16 %v480, %v479
        %v530 = vpack.c.b16 %v482, %v481
        %v531 = vpack.c.b16 %v484, %v483
        %v532 = vpack.c.b16 %v486, %v485
        %v533 = vpack.c.b16 %v488, %v487
        %v534 = vpack.c.b16 %v490, %v489
        %v535 = vpack.c.b16 %v492, %v491
        %v536 = vpack.c.b16 %v494, %v493
        %v537 = vpack.c.b16 %v496, %v495
        %v538 = vpack.c.b16 %v498, %v497
        %v539 = vpack.c.b16 %v500, %v499
        %v540 = vpack.c.b16 %v502, %v501
        %v541 = vpack.c.b16 %v504, %v503
        %v542 = vpack.c.b16 %v506, %v505
        %v543 = vpack.c.b16 %v508, %v507
        %v544 = vpack.c.b16 %v510, %v509
        %v545 = vpack.c.b16 %v512, %v511
        %v546 = vpack.c.b16 %v514, %v513
        %579 = vmatprep.subr.bf16.mxu0 0
        %580 = vmatpush1.bf16.msra.mxu0 %v522
        %581 = vmatprep.subr.bf16.mxu0 0
        %582 = vmatpush1.bf16.msra.mxu0 %v521
        %583 = vmatprep.subr.bf16.mxu0 0
        %584 = vmatpush1.bf16.msra.mxu0 %v520
        %585 = vmatprep.subr.bf16.mxu0 0
        %586 = vmatpush1.bf16.msra.mxu0 %v519
        %587 = vmatprep.subr.bf16.mxu0 0
        %588 = vmatpush1.bf16.msra.mxu0 %v518
        %589 = vmatprep.subr.bf16.mxu0 0
        %590 = vmatpush1.bf16.msra.mxu0 %v517
        %591 = vmatprep.subr.bf16.mxu0 0
        %592 = vmatpush1.bf16.msra.mxu0 %v516
        %593 = vmatprep.subr.bf16.mxu0 0
        %594 = vmatpush1.bf16.msra.mxu0 %v515
        %595 = vmatprep.subr.bf16.mxu0 0
        %596 = vmatpush2.bf16.msra.mxu0 %v530
        %597 = vmatprep.subr.bf16.mxu0 0
        %598 = vmatpush2.bf16.msra.mxu0 %v529
        %599 = vmatprep.subr.bf16.mxu0 0
        %600 = vmatpush2.bf16.msra.mxu0 %v528
        %601 = vmatprep.subr.bf16.mxu0 0
        %602 = vmatpush2.bf16.msra.mxu0 %v527
        %603 = vmatprep.subr.bf16.mxu0 0
        %604 = vmatpush2.bf16.msra.mxu0 %v526
        %605 = vmatprep.subr.bf16.mxu0 0
        %606 = vmatpush2.bf16.msra.mxu0 %v525
        %607 = vmatprep.subr.bf16.mxu0 0
        %608 = vmatpush2.bf16.msra.mxu0 %v524
        %609 = vmatprep.subr.bf16.mxu0 0
        %610 = vmatpush2.bf16.msra.mxu0 %v523
        %611 = vmatprep.mubr.bf16.mxu0 %v320
        %612 = vmatmul.mubr.bf16.gmra.mxu0 %v319
        %v613 = vpop.f32.mrf.mxu0
        %v614 = vadd.f32 0.0, %v613
        %v615 = vpop.f32.mrf.mxu0
        %v616 = vpop.f32.mrf.mxu0
        %v617 = vpop.f32.mrf.mxu0
        %618 = vdwg.mxu0
        %619 = vmatprep.subr.bf16.mxu0 0
        %620 = vmatpush1.bf16.msra.mxu0 %v538
        %621 = vmatprep.subr.bf16.mxu0 0
        %622 = vmatpush1.bf16.msra.mxu0 %v537
        %623 = vmatprep.subr.bf16.mxu0 0
        %624 = vmatpush1.bf16.msra.mxu0 %v536
        %625 = vmatprep.subr.bf16.mxu0 0
        %626 = vmatpush1.bf16.msra.mxu0 %v535
        %627 = vmatprep.subr.bf16.mxu0 0
        %628 = vmatpush1.bf16.msra.mxu0 %v534
        %629 = vmatprep.subr.bf16.mxu0 0
        %630 = vmatpush1.bf16.msra.mxu0 %v533
        %631 = vmatprep.subr.bf16.mxu0 0
        %632 = vmatpush1.bf16.msra.mxu0 %v532
        %633 = vmatprep.subr.bf16.mxu0 0
        %634 = vmatpush1.bf16.msra.mxu0 %v531
        %635 = vmatprep.subr.bf16.mxu0 0
        %636 = vmatpush2.bf16.msra.mxu0 %v546
        %637 = vmatprep.subr.bf16.mxu0 0
        %638 = vmatpush2.bf16.msra.mxu0 %v545
        %639 = vmatprep.subr.bf16.mxu0 0
        %640 = vmatpush2.bf16.msra.mxu0 %v544
        %641 = vmatprep.subr.bf16.mxu0 0
        %642 = vmatpush2.bf16.msra.mxu0 %v543
        %643 = vmatprep.subr.bf16.mxu0 0
        %644 = vmatpush2.bf16.msra.mxu0 %v542
        %645 = vmatprep.subr.bf16.mxu0 0
        %646 = vmatpush2.bf16.msra.mxu0 %v541
        %647 = vmatprep.subr.bf16.mxu0 0
        %648 = vmatpush2.bf16.msra.mxu0 %v540
        %649 = vmatprep.subr.bf16.mxu0 0
        %650 = vmatpush2.bf16.msra.mxu0 %v539
        %651 = vmatprep.mubr.bf16.mxu0 %v322
        %652 = vmatmul.mubr.bf16.gmra.mxu0 %v321
        %v653 = vpop.f32.mrf.mxu0
        %v654 = vadd.f32 %v614, %v653
        %v655 = vpop.f32.mrf.mxu0
        %v656 = vpop.f32.mrf.mxu0
        %v657 = vpop.f32.mrf.mxu0
        %658 = vdwg.mxu0
        %v659 = vadd.f32 %v295, %v654
        %660 = vst [vmem:[#allocation2] sm:$0x3] %v659
        %p661 = scmp.eq.s32.totalorder %s19, 3
        // Predicated region
        $region53: #{netwrapper_forward.3} parent=47 // pred_check
          %p662 = pneg %p661
        $region54: #{netwrapper_forward.3} parent=47 // pred_check_branch
          %664 = sbr.rel (%p662) target = $region56
        $region55: #{netwrapper_forward.3} parent=47 // pred_region
          %v665 = vld [vmem:[#allocation2] sm:$0x3]
          %v666 = vld [vmem:[%s2] sm:$0x1]
          %v668 = vlaneseq
          %v669 = vshrl.u32 %v668, 7
          %v670 = vsub.s32 0, %v669
          %v671 = vrot.slane %v666, %v670
          %v673 = vadd.f32 %v665, %v671
          %vm674 = vcmask 1041408
          %v675 = vsel %vm674, %v673, 0.0
          %v676 = vrot.slane %v675, 4
          %v677 = vadd.f32 %v675, %v676
          %v678 = vrot.slane %v677, 2
          %v679 = vadd.f32 %v677, %v678
          %v680 = vrot.slane %v679, 1
          %v681 = vadd.f32 %v679, %v680
          %v682 = vrcp.pop 2.0
          %v683 = vmul.f32 %v681, %v682
          %v684 = vsub.f32 %v673, %v683
          %v685 = vmul.f32 %v684, %v684
          %v686 = vsel %vm674, %v685, 0.0
          %v687 = vrot.slane %v686, 4
          %v688 = vadd.f32 %v686, %v687
          %v689 = vrot.slane %v688, 2
          %v690 = vadd.f32 %v688, %v689
          %v691 = vrot.slane %v690, 1
          %v692 = vadd.f32 %v690, %v691
          %v693 = vmul.f32 %v692, %v682
          %v694 = vadd.f32 %v693, 1e-05
          %v695 = vrsqrt.pop %v694
          %v696 = vmul.f32 %v684, %v695
          %v697 = vld [vmem:[%s3] sm:$0x1]
          %v699 = vlaneseq
          %v700 = vshrl.u32 %v699, 7
          %v701 = vsub.s32 0, %v700
          %v702 = vrot.slane %v697, %v701
          %v704 = vmul.f32 %v696, %v702
          %v705 = vld [vmem:[%s4] sm:$0x1]
          %v707 = vlaneseq
          %v708 = vshrl.u32 %v707, 7
          %v709 = vsub.s32 0, %v708
          %v710 = vrot.slane %v705, %v709
          %v712 = vadd.f32 %v704, %v710
          %v713 = vmax.f32 %v712, 0.0
          %v714 = vld [vmem:[%s5] sm:$0xff]
          %v715 = vld [vmem:[%s5 + $0x8] sm:$0xff]
          %v716 = vld [vmem:[%s5 + $0x10] sm:$0xff]
          %v717 = vld [vmem:[%s5 + $0x18] sm:$0xff]
          %v718 = vld [vmem:[%s5 + $0x20] sm:$0xff]
          %v719 = vld [vmem:[%s5 + $0x28] sm:$0xff]
          %v720 = vld [vmem:[%s5 + $0x30] sm:$0xff]
          %v721 = vld [vmem:[%s5 + $0x38] sm:$0xff]
          %v722 = vld [vmem:[%s5 + $0x40] sm:$0xff]
          %v723 = vld [vmem:[%s5 + $0x48] sm:$0xff]
          %v724 = vld [vmem:[%s5 + $0x50] sm:$0xff]
          %v725 = vld [vmem:[%s5 + $0x58] sm:$0xff]
          %v726 = vld [vmem:[%s5 + $0x60] sm:$0xff]
          %v727 = vld [vmem:[%s5 + $0x68] sm:$0xff]
          %v728 = vld [vmem:[%s5 + $0x70] sm:$0xff]
          %v729 = vld [vmem:[%s5 + $0x78] sm:$0xff]
          %v730 = vld [vmem:[%s6] sm:$0x1]
          %v732 = vlaneseq
          %v733 = vshrl.u32 %v732, 7
          %v734 = vsub.s32 0, %v733
          %v735 = vrot.slane %v730, %v734
          %737 = vmatprep.subr.mxu0 0.0
          %738 = vmatpush1.msra.mxu0 %v729
          %739 = vmatprep.subr.mxu0 0.0
          %740 = vmatpush1.msra.mxu0 %v728
          %741 = vmatprep.subr.mxu0 0.0
          %742 = vmatpush1.msra.mxu0 %v727
          %743 = vmatprep.subr.mxu0 0.0
          %744 = vmatpush1.msra.mxu0 %v726
          %745 = vmatprep.subr.mxu0 0.0
          %746 = vmatpush1.msra.mxu0 %v725
          %747 = vmatprep.subr.mxu0 0.0
          %748 = vmatpush1.msra.mxu0 %v724
          %749 = vmatprep.subr.mxu0 0.0
          %750 = vmatpush1.msra.mxu0 %v723
          %751 = vmatprep.subr.mxu0 0.0
          %752 = vmatpush1.msra.mxu0 %v722
          %753 = vmatprep.subr.mxu0 0.0
          %754 = vmatpush1.msra.mxu0 %v721
          %755 = vmatprep.subr.mxu0 0.0
          %756 = vmatpush1.msra.mxu0 %v720
          %757 = vmatprep.subr.mxu0 0.0
          %758 = vmatpush1.msra.mxu0 %v719
          %759 = vmatprep.subr.mxu0 0.0
          %760 = vmatpush1.msra.mxu0 %v718
          %761 = vmatprep.subr.mxu0 0.0
          %762 = vmatpush1.msra.mxu0 %v717
          %763 = vmatprep.subr.mxu0 0.0
          %764 = vmatpush1.msra.mxu0 %v716
          %765 = vmatprep.subr.mxu0 0.0
          %766 = vmatpush1.msra.mxu0 %v715
          %767 = vmatprep.subr.mxu0 0.0
          %768 = vmatpush1.msra.mxu0 %v714
          %769 = vmatprep.subr.mxu0 0.0
          %770 = vmatpush2.msra.mxu0 0.0
          %771 = vmatprep.subr.mxu0 0.0
          %772 = vmatpush2.msra.mxu0 0.0
          %773 = vmatprep.subr.mxu0 0.0
          %774 = vmatpush2.msra.mxu0 0.0
          %775 = vmatprep.subr.mxu0 0.0
          %776 = vmatpush2.msra.mxu0 0.0
          %777 = vmatprep.subr.mxu0 0.0
          %778 = vmatpush2.msra.mxu0 0.0
          %779 = vmatprep.subr.mxu0 0.0
          %780 = vmatpush2.msra.mxu0 0.0
          %781 = vmatprep.subr.mxu0 0.0
          %782 = vmatpush2.msra.mxu0 0.0
          %783 = vmatprep.subr.mxu0 0.0
          %784 = vmatpush2.msra.mxu0 0.0
          %785 = vmatprep.subr.mxu0 0.0
          %786 = vmatpush2.msra.mxu0 0.0
          %787 = vmatprep.subr.mxu0 0.0
          %788 = vmatpush2.msra.mxu0 0.0
          %789 = vmatprep.subr.mxu0 0.0
          %790 = vmatpush2.msra.mxu0 0.0
          %791 = vmatprep.subr.mxu0 0.0
          %792 = vmatpush2.msra.mxu0 0.0
          %793 = vmatprep.subr.mxu0 0.0
          %794 = vmatpush2.msra.mxu0 0.0
          %795 = vmatprep.subr.mxu0 0.0
          %796 = vmatpush2.msra.mxu0 0.0
          %797 = vmatprep.subr.mxu0 0.0
          %798 = vmatpush2.msra.mxu0 0.0
          %799 = vmatprep.subr.mxu0 0.0
          %800 = vmatpush2.msra.mxu0 0.0
          %801 = vmatprep.mubr.f32.mxu0 0.0
          %802 = vmatmul.mubr.f32.gmra.mxu0 %v713
          %v803 = vpop.f32.mrf.mxu0
          %v804 = vadd.f32 %v735, %v803
          %v805 = vpop.f32.mrf.mxu0
          %806 = vdwg.mxu0
          %807 = vst [vmem:[#allocation3] sm:$0x3] %v804
        $region56: #{netwrapper_forward.3} parent=47 // pred_fallthru
          _
        // Predicated region
        $region57: #{netwrapper_forward.3} parent=47 // pred_check
          %p808 = pneg %p189
        $region58: #{netwrapper_forward.3} parent=47 // pred_check_branch
          %810 = sbr.rel (%p808) target = $region60
        $region59: #{netwrapper_forward.3} parent=47 // pred_region
          %s812 = ssub.s32 32, 32
          %813 = vsyncadd [#allocation4], %s812
          %s815 = sshll.u32 [#allocation3], 4
          %s816 = int_to_ptr.vmem [resolvable:$true] %s815
          %818 = dma.vmem_to_hbm [thread:$0]  %s816, 32, %s7, [#allocation4]
        $region60: #{netwrapper_forward.3} parent=47 // pred_fallthru
          _
        // Predicated region
        $region61: #{netwrapper_forward.3} parent=47 // pred_check
          %p819 = pneg %p189
        $region62: #{netwrapper_forward.3} parent=47 // pred_check_branch
          %821 = sbr.rel (%p819) target = $region64
        $region63: #{netwrapper_forward.3} parent=47 // pred_region
          %822 = dma.done [#allocation4], 32
        $region64: #{netwrapper_forward.3} parent=47 // pred_fallthru
          _
      $region48: #{netwrapper_forward.3} parent=5 // pred_fallthru
        _
      %p823 = scmp.le.s32.totalorder 2, %s14
      // Predicated region
      $region65: #{netwrapper_forward.3} parent=5 // pred_check
        %p824 = pneg %p823
      $region66: #{netwrapper_forward.3} parent=5 // pred_check_branch
        %826 = sbr.rel (%p824) target = $region68
      $region67: #{netwrapper_forward.3} parent=5 // pred_region
        %s827 = ssub.s32 %s14, 2
      $region68: #{netwrapper_forward.3} parent=5 // pred_fallthru
        _
    $region6: #{netwrapper_forward.3} parent=1 // loop_footer
      %s18 = sadd.s32 1, %s14
    $region7: #{netwrapper_forward.3} parent=1 // loop_footer_branch
      %13 = sbr.rel target = $region3
    $region8: #{netwrapper_forward.3} parent=1 // loop_exit
      _
    %828 = vsyncpa [#allocation4], 1
    %s829 = scalar_lea.sflag [#allocation4], 1
    %830 = vsyncpa %s829, 1

</llo_original>
